<compile_context>
chip_gen: v5e
topology: v5e:2x2
jax: 0.10.0
libtpu: 0.0.40
codegen_flags: <defaults>
</compile_context>

<pallas_src>
import jax
import jax.numpy as jnp
from jax import lax
from jax.experimental import pallas as pl
from jax.experimental.pallas import tpu as pltpu

STATE_SIZE = 6
ACTION_SIZE = 1
H1, H2, HL, H4 = 64, 128, 64, 32      # linear1, linear2, LSTM hidden, linear4
NG = 4 * HL                           # concatenated gate width (i,f,g,o) = 256

# Lane-packed layout of the consolidated "smalls" array (segment starts are all
# multiples of 128 so every in-kernel slice begins at a vreg lane boundary).
SM_B1, SM_B2, SM_BL, SM_B4, SM_W5, SM_B5 = 0, 128, 256, 512, 640, 768
SMALLS_W = 896


def critic_kernel(state_ref, w1_ref, w2_ref, wih_ref, whh_ref, w4_ref,
                  smalls_ref, out_ref, gx_ref, hseq_ref):
    T, BB, _ = state_ref.shape

    # Consolidated small tensors: one startup DMA, static lane slices in-kernel.
    b1 = smalls_ref[:, SM_B1:SM_B1 + H1]        # (1, 64)
    b2 = smalls_ref[:, SM_B2:SM_B2 + H2]        # (1, 128)
    blstm = smalls_ref[:, SM_BL:SM_BL + NG]     # (1, 256)  b_ih+b_hh, i/f/o *0.5
    b4 = smalls_ref[:, SM_B4:SM_B4 + H4]        # (1, 32)
    w5 = smalls_ref[:, SM_W5:SM_W5 + H4]        # (1, 32)
    b5 = smalls_ref[:, SM_B5:SM_B5 + 1]         # (1, 1)

    # --- MLP front-end over all sequences & timesteps at once ----------------
    x = state_ref[...].reshape(T * BB, STATE_SIZE)
    h1 = jnp.maximum(
        jnp.dot(x, w1_ref[...], preferred_element_type=jnp.float32) + b1, 0.0)
    x2 = jnp.maximum(
        jnp.dot(h1, w2_ref[...], preferred_element_type=jnp.float32) + b2, 0.0)

    # --- LSTM(128 -> 64), 1 layer, gate order i,f,g,o -------------------------
    # Hoisted input projection + combined bias for ALL timesteps, staged through
    # VMEM scratch so the unrolled recurrence only keeps one (BB, 256) row-block
    # live at a time.
    gx_ref[...] = (jnp.dot(x2, wih_ref[...], preferred_element_type=jnp.float32)
                   + blstm)

    h = jnp.zeros((BB, HL), jnp.float32)
    c = jnp.zeros((BB, HL), jnp.float32)
    # TODO(synk): stage Whh in the MXU across the T steps via
    # pltpu.matmul_push_rhs / matmul_acc_lhs / matmul_pop (MRB in-place
    # accumulate on v7x) instead of re-pushing it through jnp.dot every step.
    for t in range(T):                  # fully unrolled: T is static and small
        z = gx_ref[t * BB:(t + 1) * BB, :] + jnp.dot(
            h, whh_ref[...], preferred_element_type=jnp.float32)    # (BB, 256)
        # i/f/o weight columns were pre-scaled by 0.5 -> ONE tanh pass yields
        # every gate: sigmoid(z) = 0.5*tanh(z/2) + 0.5, g_gate = tanh(z).
        tg = jnp.tanh(z)
        i_g = 0.5 * tg[:, 0 * HL:1 * HL] + 0.5
        f_g = 0.5 * tg[:, 1 * HL:2 * HL] + 0.5
        g_g = tg[:, 2 * HL:3 * HL]
        o_g = 0.5 * tg[:, 3 * HL:4 * HL] + 0.5
        c = f_g * c + i_g * g_g
        h = o_g * jnp.tanh(c)
        hseq_ref[t * BB:(t + 1) * BB, :] = h     # static-row store, no select

    # --- MLP back-end ---------------------------------------------------------
    h_all = hseq_ref[...]                                           # (T*BB, 64)
    h4 = jnp.maximum(
        jnp.dot(h_all, w4_ref[...], preferred_element_type=jnp.float32) + b4,
        0.0)                                                        # (T*BB, 32)
    # N=1 output head: VPU multiply + lane reduction (no 1-column MXU matmul).
    v = jnp.sum(h4 * w5, axis=-1, keepdims=True) + b5               # (T*BB, 1)
    out_ref[...] = jnp.tanh(v).reshape(T, BB, ACTION_SIZE)


def critic_forward_batched(states, pp, *, block_b=8):
    """states: (B, T, STATE_SIZE) -> values: (B, T, 1)."""
    B, T, S = states.shape
    assert B % block_b == 0, "batch must be a multiple of block_b"
    nb = B // block_b
    # Time-major so each recurrent step touches a contiguous sublane slice.
    st_tm = jnp.transpose(states, (1, 0, 2))                        # (T, B, S)
    out_tm = pl.pallas_call(
        critic_kernel,
        out_shape=jax.ShapeDtypeStruct((T, B, ACTION_SIZE), jnp.float32),
        grid_spec=pltpu.PrefetchScalarGridSpec(
            num_scalar_prefetch=0,
            grid=(nb,),
            in_specs=[
                pl.BlockSpec((T, block_b, S), lambda i: (0, i, 0)),
                pl.BlockSpec((STATE_SIZE, H1), lambda i: (0, 0)),
                pl.BlockSpec((H1, H2), lambda i: (0, 0)),
                pl.BlockSpec((H2, NG), lambda i: (0, 0)),
                pl.BlockSpec((HL, NG), lambda i: (0, 0)),
                pl.BlockSpec((HL, H4), lambda i: (0, 0)),
                pl.BlockSpec((1, SMALLS_W), lambda i: (0, 0)),
            ],
            out_specs=pl.BlockSpec((T, block_b, ACTION_SIZE),
                                   lambda i: (0, i, 0)),
            scratch_shapes=[
                pltpu.VMEM((T * block_b, NG), jnp.float32),   # gates_x staging
                pltpu.VMEM((T * block_b, HL), jnp.float32),   # hidden sequence
            ]),
        compiler_params=pltpu.CompilerParams(
            dimension_semantics=("parallel",)),
    )(st_tm, pp["w1"], pp["w2"], pp["wih_s"], pp["whh_s"], pp["w4"],
      pp["smalls"])
    # Layout plumbing (t-major -> b-major) stays in the wrapper.
    return jnp.transpose(out_tm, (1, 0, 2))                        # (B, T, 1)


def critic_forward(state, pp):
    """Single-sequence forward matching the PyTorch module: (T, 6) -> (T, 1)."""
    return critic_forward_batched(state[None], pp, block_b=1)[0]


def init_params(key):
    """Deterministic init mimicking PyTorch default uniform(-1/sqrt(fan), ...)."""
    ks = jax.random.split(key, 12)

    def u(k, shape, fan_in):
        b = 1.0 / jnp.sqrt(float(fan_in))
        return jax.random.uniform(k, shape, jnp.float32, -b, b)

    return {
        "w1": u(ks[0], (STATE_SIZE, H1), STATE_SIZE),
        "b1": u(ks[1], (1, H1), STATE_SIZE),
        "w2": u(ks[2], (H1, H2), H1),
        "b2": u(ks[3], (1, H2), H1),
        # LSTM weights stored transposed: (input, 4*hidden) / (hidden, 4*hidden)
        "wih": u(ks[4], (H2, NG), HL),
        "whh": u(ks[5], (HL, NG), HL),
        "blstm": u(ks[6], (1, NG), HL) + u(ks[7], (1, NG), HL),   # b_ih + b_hh
        "w4": u(ks[8], (HL, H4), HL),
        "b4": u(ks[9], (1, H4), HL),
        "w5": u(ks[10], (H4, ACTION_SIZE), H4),
        "b5": u(ks[11], (1, ACTION_SIZE), H4),
    }


def prepare_params(p):
    """One-time kernel-side re-layout of the PyTorch-style parameters:
       * i/f/o gate columns of wih/whh/blstm pre-scaled by 0.5 (single-tanh
         gate activations), gates kept at their natural 64-lane width,
       * the six small tensors (b1, b2, blstm, b4, w5, b5) packed into one
         lane-packed (1, 896) array -> one startup DMA instead of six,
       * w5 stored as a (1, 32) row for the VPU mul + lane-reduce output head."""
    gate_scale = jnp.concatenate([
        jnp.full((HL,), 0.5, jnp.float32),    # i
        jnp.full((HL,), 0.5, jnp.float32),    # f
        jnp.ones((HL,), jnp.float32),         # g
        jnp.full((HL,), 0.5, jnp.float32),    # o
    ])
    smalls = jnp.zeros((1, SMALLS_W), jnp.float32)
    smalls = smalls.at[:, SM_B1:SM_B1 + H1].set(p["b1"])
    smalls = smalls.at[:, SM_B2:SM_B2 + H2].set(p["b2"])
    smalls = smalls.at[:, SM_BL:SM_BL + NG].set(p["blstm"] * gate_scale)
    smalls = smalls.at[:, SM_B4:SM_B4 + H4].set(p["b4"])
    smalls = smalls.at[:, SM_W5:SM_W5 + H4].set(p["w5"].T)
    smalls = smalls.at[:, SM_B5:SM_B5 + 1].set(p["b5"])
    # TODO(synk): optional v5e lever per the review — store wih_s/whh_s in bf16
    # and cast x2/h to bf16 in-kernel (keep f32 accumulation); requires
    # loosening the f32 reference tolerance to a few e-3.
    return {
        "w1": p["w1"], "w2": p["w2"],
        "wih_s": p["wih"] * gate_scale,       # (128, 256), i/f/o cols * 0.5
        "whh_s": p["whh"] * gate_scale,       # (64, 256)
        "w4": p["w4"],                        # (64, 32)
        "smalls": smalls,                     # (1, 896)
    }


def ref_forward_single(state, p):
    """Pure-JAX reference (original, unscaled params) for one (T, 6) sequence."""
    h1 = jax.nn.relu(state @ p["w1"] + p["b1"][0])
    h2 = jax.nn.relu(h1 @ p["w2"] + p["b2"][0])

    def step(carry, x_t):
        h, c = carry
        gates = x_t @ p["wih"] + h @ p["whh"] + p["blstm"][0]
        i = jax.nn.sigmoid(gates[0 * HL:1 * HL])
        f = jax.nn.sigmoid(gates[1 * HL:2 * HL])
        g = jnp.tanh(gates[2 * HL:3 * HL])
        o = jax.nn.sigmoid(gates[3 * HL:4 * HL])
        c = f * c + i * g
        h = o * jnp.tanh(c)
        return (h, c), h

    (_, _), hs = lax.scan(step, (jnp.zeros(HL), jnp.zeros(HL)), h2)
    h4 = jax.nn.relu(hs @ p["w4"] + p["b4"][0])
    return jnp.tanh(h4 @ p["w5"] + p["b5"][0])


if __name__ == "__main__":
    key = jax.random.PRNGKey(0)
    k_state, k_params = jax.random.split(key)

    B, T = 16, 8      # 16 independent sequences of 8 states each
    states = jax.random.normal(k_state, (B, T, STATE_SIZE), jnp.float32)
    params = init_params(k_params)
    prepped = prepare_params(params)       # one-time weight re-layout

    values = jax.block_until_ready(
        critic_forward_batched(states, prepped, block_b=8))

    expected = jax.vmap(ref_forward_single, in_axes=(0, None))(states, params)
    assert values.shape == (B, T, ACTION_SIZE)
    assert jnp.allclose(values, expected, rtol=1e-3, atol=1e-3), (
        f"batched mismatch, max abs err = {jnp.max(jnp.abs(values - expected))}")

    # Single-sequence path preserving the original PyTorch module signature.
    value1 = jax.block_until_ready(critic_forward(states[0], prepped))
    assert value1.shape == (T, ACTION_SIZE)
    assert jnp.allclose(value1, expected[0], rtol=1e-3, atol=1e-3), (
        "single-sequence mismatch")

    print("KERNEL_OK")
</pallas_src>

<mosaic_0001>
module attributes {stable_mosaic.version = 11 : i64} {
  func.func @critic_kernel(%arg0: i32, %arg1: memref<8x8x6xf32, #tpu.memory_space<vmem>>, %arg2: memref<6x64xf32, #tpu.memory_space<vmem>>, %arg3: memref<64x128xf32, #tpu.memory_space<vmem>>, %arg4: memref<128x256xf32, #tpu.memory_space<vmem>>, %arg5: memref<64x256xf32, #tpu.memory_space<vmem>>, %arg6: memref<64x32xf32, #tpu.memory_space<vmem>>, %arg7: memref<1x896xf32, #tpu.memory_space<vmem>>, %arg8: memref<8x8x1xf32, #tpu.memory_space<vmem>>, %arg9: memref<64x256xf32, #tpu.memory_space<vmem>>, %arg10: memref<64x64xf32, #tpu.memory_space<vmem>>) attributes {dimension_semantics = [#tpu.dimension_semantics<parallel>], iteration_bounds = array<i64: 2>, scalar_prefetch = 0 : i64, scratch_operands = 2 : i64, tpu.core_type = #tpu.core_type<tc>, window_params = [{transform_indices = @transform_0, window_bounds = array<i64: 8, 8, 6>}, {pipeline_mode = #tpu.pipeline_mode<synchronous>, transform_indices = @transform_1, window_bounds = array<i64: 6, 64>}, {pipeline_mode = #tpu.pipeline_mode<synchronous>, transform_indices = @transform_2, window_bounds = array<i64: 64, 128>}, {pipeline_mode = #tpu.pipeline_mode<synchronous>, transform_indices = @transform_3, window_bounds = array<i64: 128, 256>}, {pipeline_mode = #tpu.pipeline_mode<synchronous>, transform_indices = @transform_4, window_bounds = array<i64: 64, 256>}, {pipeline_mode = #tpu.pipeline_mode<synchronous>, transform_indices = @transform_5, window_bounds = array<i64: 64, 32>}, {pipeline_mode = #tpu.pipeline_mode<synchronous>, transform_indices = @transform_6, window_bounds = array<i64: 1, 896>}, {transform_indices = @transform_7, window_bounds = array<i64: 8, 8, 1>}]} {
    %c0 = arith.constant 0 : index
    %c0_0 = arith.constant 0 : index
    %0 = vector.load %arg7[%c0, %c0_0] : memref<1x896xf32, #tpu.memory_space<vmem>>, vector<1x64xf32>
    %c0_1 = arith.constant 0 : index
    %c128 = arith.constant 128 : index
    %1 = vector.load %arg7[%c0_1, %c128] : memref<1x896xf32, #tpu.memory_space<vmem>>, vector<1x128xf32>
    %c0_2 = arith.constant 0 : index
    %c256 = arith.constant 256 : index
    %2 = vector.load %arg7[%c0_2, %c256] : memref<1x896xf32, #tpu.memory_space<vmem>>, vector<1x256xf32>
    %c0_3 = arith.constant 0 : index
    %c512 = arith.constant 512 : index
    %3 = vector.load %arg7[%c0_3, %c512] : memref<1x896xf32, #tpu.memory_space<vmem>>, vector<1x32xf32>
    %c0_4 = arith.constant 0 : index
    %c640 = arith.constant 640 : index
    %4 = vector.load %arg7[%c0_4, %c640] : memref<1x896xf32, #tpu.memory_space<vmem>>, vector<1x32xf32>
    %c0_5 = arith.constant 0 : index
    %c768 = arith.constant 768 : index
    %5 = vector.load %arg7[%c0_5, %c768] : memref<1x896xf32, #tpu.memory_space<vmem>>, vector<1x1xf32>
    %c0_6 = arith.constant 0 : index
    %c0_7 = arith.constant 0 : index
    %c0_8 = arith.constant 0 : index
    %6 = vector.load %arg1[%c0_6, %c0_7, %c0_8] : memref<8x8x6xf32, #tpu.memory_space<vmem>>, vector<8x8x6xf32>
    %7 = vector.shape_cast %6 : vector<8x8x6xf32> to vector<64x6xf32>
    %c0_9 = arith.constant 0 : index
    %c0_10 = arith.constant 0 : index
    %8 = vector.load %arg2[%c0_9, %c0_10] : memref<6x64xf32, #tpu.memory_space<vmem>>, vector<6x64xf32>
    %cst = arith.constant dense<0.000000e+00> : vector<64x64xf32>
    %9 = tpu.matmul %7, %8, %cst {dimension_numbers = #tpu.dot_dimension_numbers<[1], [0], [0], [1], [0, 0, 1, 1], [], []>} : vector<64x6xf32>, vector<6x64xf32>, vector<64x64xf32> -> vector<64x64xf32>
    %10 = vector.broadcast %0 : vector<1x64xf32> to vector<64x64xf32>
    %11 = arith.addf %9, %10 : vector<64x64xf32>
    %cst_11 = arith.constant 0.000000e+00 : f32
    %12 = vector.broadcast %cst_11 : f32 to vector<64x64xf32>
    %13 = arith.maximumf %11, %12 : vector<64x64xf32>
    %c0_12 = arith.constant 0 : index
    %c0_13 = arith.constant 0 : index
    %14 = vector.load %arg3[%c0_12, %c0_13] : memref<64x128xf32, #tpu.memory_space<vmem>>, vector<64x128xf32>
    %cst_14 = arith.constant dense<0.000000e+00> : vector<64x128xf32>
    %15 = tpu.matmul %13, %14, %cst_14 {dimension_numbers = #tpu.dot_dimension_numbers<[1], [0], [0], [1], [0, 0, 1, 1], [], []>} : vector<64x64xf32>, vector<64x128xf32>, vector<64x128xf32> -> vector<64x128xf32>
    %16 = vector.broadcast %1 : vector<1x128xf32> to vector<64x128xf32>
    %17 = arith.addf %15, %16 : vector<64x128xf32>
    %cst_15 = arith.constant 0.000000e+00 : f32
    %18 = vector.broadcast %cst_15 : f32 to vector<64x128xf32>
    %19 = arith.maximumf %17, %18 : vector<64x128xf32>
    %c0_16 = arith.constant 0 : index
    %c0_17 = arith.constant 0 : index
    %20 = vector.load %arg4[%c0_16, %c0_17] : memref<128x256xf32, #tpu.memory_space<vmem>>, vector<128x256xf32>
    %cst_18 = arith.constant dense<0.000000e+00> : vector<64x256xf32>
    %21 = tpu.matmul %19, %20, %cst_18 {dimension_numbers = #tpu.dot_dimension_numbers<[1], [0], [0], [1], [0, 0, 1, 1], [], []>} : vector<64x128xf32>, vector<128x256xf32>, vector<64x256xf32> -> vector<64x256xf32>
    %22 = vector.broadcast %2 : vector<1x256xf32> to vector<64x256xf32>
    %23 = arith.addf %21, %22 : vector<64x256xf32>
    %c0_19 = arith.constant 0 : index
    %c0_20 = arith.constant 0 : index
    %24 = vector.load %arg9[%c0_19, %c0_20] : memref<64x256xf32, #tpu.memory_space<vmem>>, vector<64x256xf32>
    tpu.vector_store %arg9[%c0_19, %c0_20], %23 {strides = array<i32>} : memref<64x256xf32, #tpu.memory_space<vmem>>, vector<64x256xf32>,
    %cst_21 = arith.constant 0.000000e+00 : f32
    %25 = vector.broadcast %cst_21 : f32 to vector<8x64xf32>
    %cst_22 = arith.constant 0.000000e+00 : f32
    %26 = vector.broadcast %cst_22 : f32 to vector<8x64xf32>
    %c0_23 = arith.constant 0 : index
    %c0_24 = arith.constant 0 : index
    %27 = vector.load %arg9[%c0_23, %c0_24] : memref<64x256xf32, #tpu.memory_space<vmem>>, vector<8x256xf32>
    %c0_25 = arith.constant 0 : index
    %c0_26 = arith.constant 0 : index
    %28 = vector.load %arg5[%c0_25, %c0_26] : memref<64x256xf32, #tpu.memory_space<vmem>>, vector<64x256xf32>
    %cst_27 = arith.constant dense<0.000000e+00> : vector<8x256xf32>
    %29 = tpu.matmul %25, %28, %cst_27 {dimension_numbers = #tpu.dot_dimension_numbers<[1], [0], [0], [1], [0, 0, 1, 1], [], []>} : vector<8x64xf32>, vector<64x256xf32>, vector<8x256xf32> -> vector<8x256xf32>
    %30 = arith.addf %27, %29 : vector<8x256xf32>
    %31 = math.tanh %30 : vector<8x256xf32>
    %32 = vector.extract_strided_slice %31 {offsets = [0, 0], sizes = [8, 64], strides = [1, 1]} : vector<8x256xf32> to vector<8x64xf32>
    %cst_28 = arith.constant 5.000000e-01 : f32
    %33 = vector.broadcast %cst_28 : f32 to vector<8x64xf32>
    %34 = arith.mulf %33, %32 : vector<8x64xf32>
    %cst_29 = arith.constant 5.000000e-01 : f32
    %35 = vector.broadcast %cst_29 : f32 to vector<8x64xf32>
    %36 = arith.addf %34, %35 : vector<8x64xf32>
    %37 = vector.extract_strided_slice %31 {offsets = [0, 64], sizes = [8, 64], strides = [1, 1]} : vector<8x256xf32> to vector<8x64xf32>
    %cst_30 = arith.constant 5.000000e-01 : f32
    %38 = vector.broadcast %cst_30 : f32 to vector<8x64xf32>
    %39 = arith.mulf %38, %37 : vector<8x64xf32>
    %cst_31 = arith.constant 5.000000e-01 : f32
    %40 = vector.broadcast %cst_31 : f32 to vector<8x64xf32>
    %41 = arith.addf %39, %40 : vector<8x64xf32>
    %42 = vector.extract_strided_slice %31 {offsets = [0, 128], sizes = [8, 64], strides = [1, 1]} : vector<8x256xf32> to vector<8x64xf32>
    %43 = vector.extract_strided_slice %31 {offsets = [0, 192], sizes = [8, 64], strides = [1, 1]} : vector<8x256xf32> to vector<8x64xf32>
    %cst_32 = arith.constant 5.000000e-01 : f32
    %44 = vector.broadcast %cst_32 : f32 to vector<8x64xf32>
    %45 = arith.mulf %44, %43 : vector<8x64xf32>
    %cst_33 = arith.constant 5.000000e-01 : f32
    %46 = vector.broadcast %cst_33 : f32 to vector<8x64xf32>
    %47 = arith.addf %45, %46 : vector<8x64xf32>
    %48 = arith.mulf %41, %26 : vector<8x64xf32>
    %49 = arith.mulf %36, %42 : vector<8x64xf32>
    %50 = arith.addf %48, %49 : vector<8x64xf32>
    %51 = math.tanh %50 : vector<8x64xf32>
    %52 = arith.mulf %47, %51 : vector<8x64xf32>
    %c0_34 = arith.constant 0 : index
    %c0_35 = arith.constant 0 : index
    %53 = vector.load %arg10[%c0_34, %c0_35] : memref<64x64xf32, #tpu.memory_space<vmem>>, vector<8x64xf32>
    tpu.vector_store %arg10[%c0_34, %c0_35], %52 {strides = array<i32>} : memref<64x64xf32, #tpu.memory_space<vmem>>, vector<8x64xf32>,
    %c8 = arith.constant 8 : index
    %c0_36 = arith.constant 0 : index
    %54 = vector.load %arg9[%c8, %c0_36] : memref<64x256xf32, #tpu.memory_space<vmem>>, vector<8x256xf32>
    %c0_37 = arith.constant 0 : index
    %c0_38 = arith.constant 0 : index
    %55 = vector.load %arg5[%c0_37, %c0_38] : memref<64x256xf32, #tpu.memory_space<vmem>>, vector<64x256xf32>
    %cst_39 = arith.constant dense<0.000000e+00> : vector<8x256xf32>
    %56 = tpu.matmul %52, %55, %cst_39 {dimension_numbers = #tpu.dot_dimension_numbers<[1], [0], [0], [1], [0, 0, 1, 1], [], []>} : vector<8x64xf32>, vector<64x256xf32>, vector<8x256xf32> -> vector<8x256xf32>
    %57 = arith.addf %54, %56 : vector<8x256xf32>
    %58 = math.tanh %57 : vector<8x256xf32>
    %59 = vector.extract_strided_slice %58 {offsets = [0, 0], sizes = [8, 64], strides = [1, 1]} : vector<8x256xf32> to vector<8x64xf32>
    %cst_40 = arith.constant 5.000000e-01 : f32
    %60 = vector.broadcast %cst_40 : f32 to vector<8x64xf32>
    %61 = arith.mulf %60, %59 : vector<8x64xf32>
    %cst_41 = arith.constant 5.000000e-01 : f32
    %62 = vector.broadcast %cst_41 : f32 to vector<8x64xf32>
    %63 = arith.addf %61, %62 : vector<8x64xf32>
    %64 = vector.extract_strided_slice %58 {offsets = [0, 64], sizes = [8, 64], strides = [1, 1]} : vector<8x256xf32> to vector<8x64xf32>
    %cst_42 = arith.constant 5.000000e-01 : f32
    %65 = vector.broadcast %cst_42 : f32 to vector<8x64xf32>
    %66 = arith.mulf %65, %64 : vector<8x64xf32>
    %cst_43 = arith.constant 5.000000e-01 : f32
    %67 = vector.broadcast %cst_43 : f32 to vector<8x64xf32>
    %68 = arith.addf %66, %67 : vector<8x64xf32>
    %69 = vector.extract_strided_slice %58 {offsets = [0, 128], sizes = [8, 64], strides = [1, 1]} : vector<8x256xf32> to vector<8x64xf32>
    %70 = vector.extract_strided_slice %58 {offsets = [0, 192], sizes = [8, 64], strides = [1, 1]} : vector<8x256xf32> to vector<8x64xf32>
    %cst_44 = arith.constant 5.000000e-01 : f32
    %71 = vector.broadcast %cst_44 : f32 to vector<8x64xf32>
    %72 = arith.mulf %71, %70 : vector<8x64xf32>
    %cst_45 = arith.constant 5.000000e-01 : f32
    %73 = vector.broadcast %cst_45 : f32 to vector<8x64xf32>
    %74 = arith.addf %72, %73 : vector<8x64xf32>
    %75 = arith.mulf %68, %50 : vector<8x64xf32>
    %76 = arith.mulf %63, %69 : vector<8x64xf32>
    %77 = arith.addf %75, %76 : vector<8x64xf32>
    %78 = math.tanh %77 : vector<8x64xf32>
    %79 = arith.mulf %74, %78 : vector<8x64xf32>
    %c8_46 = arith.constant 8 : index
    %c0_47 = arith.constant 0 : index
    %80 = vector.load %arg10[%c8_46, %c0_47] : memref<64x64xf32, #tpu.memory_space<vmem>>, vector<8x64xf32>
    tpu.vector_store %arg10[%c8_46, %c0_47], %79 {strides = array<i32>} : memref<64x64xf32, #tpu.memory_space<vmem>>, vector<8x64xf32>,
    %c16 = arith.constant 16 : index
    %c0_48 = arith.constant 0 : index
    %81 = vector.load %arg9[%c16, %c0_48] : memref<64x256xf32, #tpu.memory_space<vmem>>, vector<8x256xf32>
    %c0_49 = arith.constant 0 : index
    %c0_50 = arith.constant 0 : index
    %82 = vector.load %arg5[%c0_49, %c0_50] : memref<64x256xf32, #tpu.memory_space<vmem>>, vector<64x256xf32>
    %cst_51 = arith.constant dense<0.000000e+00> : vector<8x256xf32>
    %83 = tpu.matmul %79, %82, %cst_51 {dimension_numbers = #tpu.dot_dimension_numbers<[1], [0], [0], [1], [0, 0, 1, 1], [], []>} : vector<8x64xf32>, vector<64x256xf32>, vector<8x256xf32> -> vector<8x256xf32>
    %84 = arith.addf %81, %83 : vector<8x256xf32>
    %85 = math.tanh %84 : vector<8x256xf32>
    %86 = vector.extract_strided_slice %85 {offsets = [0, 0], sizes = [8, 64], strides = [1, 1]} : vector<8x256xf32> to vector<8x64xf32>
    %cst_52 = arith.constant 5.000000e-01 : f32
    %87 = vector.broadcast %cst_52 : f32 to vector<8x64xf32>
    %88 = arith.mulf %87, %86 : vector<8x64xf32>
    %cst_53 = arith.constant 5.000000e-01 : f32
    %89 = vector.broadcast %cst_53 : f32 to vector<8x64xf32>
    %90 = arith.addf %88, %89 : vector<8x64xf32>
    %91 = vector.extract_strided_slice %85 {offsets = [0, 64], sizes = [8, 64], strides = [1, 1]} : vector<8x256xf32> to vector<8x64xf32>
    %cst_54 = arith.constant 5.000000e-01 : f32
    %92 = vector.broadcast %cst_54 : f32 to vector<8x64xf32>
    %93 = arith.mulf %92, %91 : vector<8x64xf32>
    %cst_55 = arith.constant 5.000000e-01 : f32
    %94 = vector.broadcast %cst_55 : f32 to vector<8x64xf32>
    %95 = arith.addf %93, %94 : vector<8x64xf32>
    %96 = vector.extract_strided_slice %85 {offsets = [0, 128], sizes = [8, 64], strides = [1, 1]} : vector<8x256xf32> to vector<8x64xf32>
    %97 = vector.extract_strided_slice %85 {offsets = [0, 192], sizes = [8, 64], strides = [1, 1]} : vector<8x256xf32> to vector<8x64xf32>
    %cst_56 = arith.constant 5.000000e-01 : f32
    %98 = vector.broadcast %cst_56 : f32 to vector<8x64xf32>
    %99 = arith.mulf %98, %97 : vector<8x64xf32>
    %cst_57 = arith.constant 5.000000e-01 : f32
    %100 = vector.broadcast %cst_57 : f32 to vector<8x64xf32>
    %101 = arith.addf %99, %100 : vector<8x64xf32>
    %102 = arith.mulf %95, %77 : vector<8x64xf32>
    %103 = arith.mulf %90, %96 : vector<8x64xf32>
    %104 = arith.addf %102, %103 : vector<8x64xf32>
    %105 = math.tanh %104 : vector<8x64xf32>
    %106 = arith.mulf %101, %105 : vector<8x64xf32>
    %c16_58 = arith.constant 16 : index
    %c0_59 = arith.constant 0 : index
    %107 = vector.load %arg10[%c16_58, %c0_59] : memref<64x64xf32, #tpu.memory_space<vmem>>, vector<8x64xf32>
    tpu.vector_store %arg10[%c16_58, %c0_59], %106 {strides = array<i32>} : memref<64x64xf32, #tpu.memory_space<vmem>>, vector<8x64xf32>,
    %c24 = arith.constant 24 : index
    %c0_60 = arith.constant 0 : index
    %108 = vector.load %arg9[%c24, %c0_60] : memref<64x256xf32, #tpu.memory_space<vmem>>, vector<8x256xf32>
    %c0_61 = arith.constant 0 : index
    %c0_62 = arith.constant 0 : index
    %109 = vector.load %arg5[%c0_61, %c0_62] : memref<64x256xf32, #tpu.memory_space<vmem>>, vector<64x256xf32>
    %cst_63 = arith.constant dense<0.000000e+00> : vector<8x256xf32>
    %110 = tpu.matmul %106, %109, %cst_63 {dimension_numbers = #tpu.dot_dimension_numbers<[1], [0], [0], [1], [0, 0, 1, 1], [], []>} : vector<8x64xf32>, vector<64x256xf32>, vector<8x256xf32> -> vector<8x256xf32>
    %111 = arith.addf %108, %110 : vector<8x256xf32>
    %112 = math.tanh %111 : vector<8x256xf32>
    %113 = vector.extract_strided_slice %112 {offsets = [0, 0], sizes = [8, 64], strides = [1, 1]} : vector<8x256xf32> to vector<8x64xf32>
    %cst_64 = arith.constant 5.000000e-01 : f32
    %114 = vector.broadcast %cst_64 : f32 to vector<8x64xf32>
    %115 = arith.mulf %114, %113 : vector<8x64xf32>
    %cst_65 = arith.constant 5.000000e-01 : f32
    %116 = vector.broadcast %cst_65 : f32 to vector<8x64xf32>
    %117 = arith.addf %115, %116 : vector<8x64xf32>
    %118 = vector.extract_strided_slice %112 {offsets = [0, 64], sizes = [8, 64], strides = [1, 1]} : vector<8x256xf32> to vector<8x64xf32>
    %cst_66 = arith.constant 5.000000e-01 : f32
    %119 = vector.broadcast %cst_66 : f32 to vector<8x64xf32>
    %120 = arith.mulf %119, %118 : vector<8x64xf32>
    %cst_67 = arith.constant 5.000000e-01 : f32
    %121 = vector.broadcast %cst_67 : f32 to vector<8x64xf32>
    %122 = arith.addf %120, %121 : vector<8x64xf32>
    %123 = vector.extract_strided_slice %112 {offsets = [0, 128], sizes = [8, 64], strides = [1, 1]} : vector<8x256xf32> to vector<8x64xf32>
    %124 = vector.extract_strided_slice %112 {offsets = [0, 192], sizes = [8, 64], strides = [1, 1]} : vector<8x256xf32> to vector<8x64xf32>
    %cst_68 = arith.constant 5.000000e-01 : f32
    %125 = vector.broadcast %cst_68 : f32 to vector<8x64xf32>
    %126 = arith.mulf %125, %124 : vector<8x64xf32>
    %cst_69 = arith.constant 5.000000e-01 : f32
    %127 = vector.broadcast %cst_69 : f32 to vector<8x64xf32>
    %128 = arith.addf %126, %127 : vector<8x64xf32>
    %129 = arith.mulf %122, %104 : vector<8x64xf32>
    %130 = arith.mulf %117, %123 : vector<8x64xf32>
    %131 = arith.addf %129, %130 : vector<8x64xf32>
    %132 = math.tanh %131 : vector<8x64xf32>
    %133 = arith.mulf %128, %132 : vector<8x64xf32>
    %c24_70 = arith.constant 24 : index
    %c0_71 = arith.constant 0 : index
    %134 = vector.load %arg10[%c24_70, %c0_71] : memref<64x64xf32, #tpu.memory_space<vmem>>, vector<8x64xf32>
    tpu.vector_store %arg10[%c24_70, %c0_71], %133 {strides = array<i32>} : memref<64x64xf32, #tpu.memory_space<vmem>>, vector<8x64xf32>,
    %c32 = arith.constant 32 : index
    %c0_72 = arith.constant 0 : index
    %135 = vector.load %arg9[%c32, %c0_72] : memref<64x256xf32, #tpu.memory_space<vmem>>, vector<8x256xf32>
    %c0_73 = arith.constant 0 : index
    %c0_74 = arith.constant 0 : index
    %136 = vector.load %arg5[%c0_73, %c0_74] : memref<64x256xf32, #tpu.memory_space<vmem>>, vector<64x256xf32>
    %cst_75 = arith.constant dense<0.000000e+00> : vector<8x256xf32>
    %137 = tpu.matmul %133, %136, %cst_75 {dimension_numbers = #tpu.dot_dimension_numbers<[1], [0], [0], [1], [0, 0, 1, 1], [], []>} : vector<8x64xf32>, vector<64x256xf32>, vector<8x256xf32> -> vector<8x256xf32>
    %138 = arith.addf %135, %137 : vector<8x256xf32>
    %139 = math.tanh %138 : vector<8x256xf32>
    %140 = vector.extract_strided_slice %139 {offsets = [0, 0], sizes = [8, 64], strides = [1, 1]} : vector<8x256xf32> to vector<8x64xf32>
    %cst_76 = arith.constant 5.000000e-01 : f32
    %141 = vector.broadcast %cst_76 : f32 to vector<8x64xf32>
    %142 = arith.mulf %141, %140 : vector<8x64xf32>
    %cst_77 = arith.constant 5.000000e-01 : f32
    %143 = vector.broadcast %cst_77 : f32 to vector<8x64xf32>
    %144 = arith.addf %142, %143 : vector<8x64xf32>
    %145 = vector.extract_strided_slice %139 {offsets = [0, 64], sizes = [8, 64], strides = [1, 1]} : vector<8x256xf32> to vector<8x64xf32>
    %cst_78 = arith.constant 5.000000e-01 : f32
    %146 = vector.broadcast %cst_78 : f32 to vector<8x64xf32>
    %147 = arith.mulf %146, %145 : vector<8x64xf32>
    %cst_79 = arith.constant 5.000000e-01 : f32
    %148 = vector.broadcast %cst_79 : f32 to vector<8x64xf32>
    %149 = arith.addf %147, %148 : vector<8x64xf32>
    %150 = vector.extract_strided_slice %139 {offsets = [0, 128], sizes = [8, 64], strides = [1, 1]} : vector<8x256xf32> to vector<8x64xf32>
    %151 = vector.extract_strided_slice %139 {offsets = [0, 192], sizes = [8, 64], strides = [1, 1]} : vector<8x256xf32> to vector<8x64xf32>
    %cst_80 = arith.constant 5.000000e-01 : f32
    %152 = vector.broadcast %cst_80 : f32 to vector<8x64xf32>
    %153 = arith.mulf %152, %151 : vector<8x64xf32>
    %cst_81 = arith.constant 5.000000e-01 : f32
    %154 = vector.broadcast %cst_81 : f32 to vector<8x64xf32>
    %155 = arith.addf %153, %154 : vector<8x64xf32>
    %156 = arith.mulf %149, %131 : vector<8x64xf32>
    %157 = arith.mulf %144, %150 : vector<8x64xf32>
    %158 = arith.addf %156, %157 : vector<8x64xf32>
    %159 = math.tanh %158 : vector<8x64xf32>
    %160 = arith.mulf %155, %159 : vector<8x64xf32>
    %c32_82 = arith.constant 32 : index
    %c0_83 = arith.constant 0 : index
    %161 = vector.load %arg10[%c32_82, %c0_83] : memref<64x64xf32, #tpu.memory_space<vmem>>, vector<8x64xf32>
    tpu.vector_store %arg10[%c32_82, %c0_83], %160 {strides = array<i32>} : memref<64x64xf32, #tpu.memory_space<vmem>>, vector<8x64xf32>,
    %c40 = arith.constant 40 : index
    %c0_84 = arith.constant 0 : index
    %162 = vector.load %arg9[%c40, %c0_84] : memref<64x256xf32, #tpu.memory_space<vmem>>, vector<8x256xf32>
    %c0_85 = arith.constant 0 : index
    %c0_86 = arith.constant 0 : index
    %163 = vector.load %arg5[%c0_85, %c0_86] : memref<64x256xf32, #tpu.memory_space<vmem>>, vector<64x256xf32>
    %cst_87 = arith.constant dense<0.000000e+00> : vector<8x256xf32>
    %164 = tpu.matmul %160, %163, %cst_87 {dimension_numbers = #tpu.dot_dimension_numbers<[1], [0], [0], [1], [0, 0, 1, 1], [], []>} : vector<8x64xf32>, vector<64x256xf32>, vector<8x256xf32> -> vector<8x256xf32>
    %165 = arith.addf %162, %164 : vector<8x256xf32>
    %166 = math.tanh %165 : vector<8x256xf32>
    %167 = vector.extract_strided_slice %166 {offsets = [0, 0], sizes = [8, 64], strides = [1, 1]} : vector<8x256xf32> to vector<8x64xf32>
    %cst_88 = arith.constant 5.000000e-01 : f32
    %168 = vector.broadcast %cst_88 : f32 to vector<8x64xf32>
    %169 = arith.mulf %168, %167 : vector<8x64xf32>
    %cst_89 = arith.constant 5.000000e-01 : f32
    %170 = vector.broadcast %cst_89 : f32 to vector<8x64xf32>
    %171 = arith.addf %169, %170 : vector<8x64xf32>
    %172 = vector.extract_strided_slice %166 {offsets = [0, 64], sizes = [8, 64], strides = [1, 1]} : vector<8x256xf32> to vector<8x64xf32>
    %cst_90 = arith.constant 5.000000e-01 : f32
    %173 = vector.broadcast %cst_90 : f32 to vector<8x64xf32>
    %174 = arith.mulf %173, %172 : vector<8x64xf32>
    %cst_91 = arith.constant 5.000000e-01 : f32
    %175 = vector.broadcast %cst_91 : f32 to vector<8x64xf32>
    %176 = arith.addf %174, %175 : vector<8x64xf32>
    %177 = vector.extract_strided_slice %166 {offsets = [0, 128], sizes = [8, 64], strides = [1, 1]} : vector<8x256xf32> to vector<8x64xf32>
    %178 = vector.extract_strided_slice %166 {offsets = [0, 192], sizes = [8, 64], strides = [1, 1]} : vector<8x256xf32> to vector<8x64xf32>
    %cst_92 = arith.constant 5.000000e-01 : f32
    %179 = vector.broadcast %cst_92 : f32 to vector<8x64xf32>
    %180 = arith.mulf %179, %178 : vector<8x64xf32>
    %cst_93 = arith.constant 5.000000e-01 : f32
    %181 = vector.broadcast %cst_93 : f32 to vector<8x64xf32>
    %182 = arith.addf %180, %181 : vector<8x64xf32>
    %183 = arith.mulf %176, %158 : vector<8x64xf32>
    %184 = arith.mulf %171, %177 : vector<8x64xf32>
    %185 = arith.addf %183, %184 : vector<8x64xf32>
    %186 = math.tanh %185 : vector<8x64xf32>
    %187 = arith.mulf %182, %186 : vector<8x64xf32>
    %c40_94 = arith.constant 40 : index
    %c0_95 = arith.constant 0 : index
    %188 = vector.load %arg10[%c40_94, %c0_95] : memref<64x64xf32, #tpu.memory_space<vmem>>, vector<8x64xf32>
    tpu.vector_store %arg10[%c40_94, %c0_95], %187 {strides = array<i32>} : memref<64x64xf32, #tpu.memory_space<vmem>>, vector<8x64xf32>,
    %c48 = arith.constant 48 : index
    %c0_96 = arith.constant 0 : index
    %189 = vector.load %arg9[%c48, %c0_96] : memref<64x256xf32, #tpu.memory_space<vmem>>, vector<8x256xf32>
    %c0_97 = arith.constant 0 : index
    %c0_98 = arith.constant 0 : index
    %190 = vector.load %arg5[%c0_97, %c0_98] : memref<64x256xf32, #tpu.memory_space<vmem>>, vector<64x256xf32>
    %cst_99 = arith.constant dense<0.000000e+00> : vector<8x256xf32>
    %191 = tpu.matmul %187, %190, %cst_99 {dimension_numbers = #tpu.dot_dimension_numbers<[1], [0], [0], [1], [0, 0, 1, 1], [], []>} : vector<8x64xf32>, vector<64x256xf32>, vector<8x256xf32> -> vector<8x256xf32>
    %192 = arith.addf %189, %191 : vector<8x256xf32>
    %193 = math.tanh %192 : vector<8x256xf32>
    %194 = vector.extract_strided_slice %193 {offsets = [0, 0], sizes = [8, 64], strides = [1, 1]} : vector<8x256xf32> to vector<8x64xf32>
    %cst_100 = arith.constant 5.000000e-01 : f32
    %195 = vector.broadcast %cst_100 : f32 to vector<8x64xf32>
    %196 = arith.mulf %195, %194 : vector<8x64xf32>
    %cst_101 = arith.constant 5.000000e-01 : f32
    %197 = vector.broadcast %cst_101 : f32 to vector<8x64xf32>
    %198 = arith.addf %196, %197 : vector<8x64xf32>
    %199 = vector.extract_strided_slice %193 {offsets = [0, 64], sizes = [8, 64], strides = [1, 1]} : vector<8x256xf32> to vector<8x64xf32>
    %cst_102 = arith.constant 5.000000e-01 : f32
    %200 = vector.broadcast %cst_102 : f32 to vector<8x64xf32>
    %201 = arith.mulf %200, %199 : vector<8x64xf32>
    %cst_103 = arith.constant 5.000000e-01 : f32
    %202 = vector.broadcast %cst_103 : f32 to vector<8x64xf32>
    %203 = arith.addf %201, %202 : vector<8x64xf32>
    %204 = vector.extract_strided_slice %193 {offsets = [0, 128], sizes = [8, 64], strides = [1, 1]} : vector<8x256xf32> to vector<8x64xf32>
    %205 = vector.extract_strided_slice %193 {offsets = [0, 192], sizes = [8, 64], strides = [1, 1]} : vector<8x256xf32> to vector<8x64xf32>
    %cst_104 = arith.constant 5.000000e-01 : f32
    %206 = vector.broadcast %cst_104 : f32 to vector<8x64xf32>
    %207 = arith.mulf %206, %205 : vector<8x64xf32>
    %cst_105 = arith.constant 5.000000e-01 : f32
    %208 = vector.broadcast %cst_105 : f32 to vector<8x64xf32>
    %209 = arith.addf %207, %208 : vector<8x64xf32>
    %210 = arith.mulf %203, %185 : vector<8x64xf32>
    %211 = arith.mulf %198, %204 : vector<8x64xf32>
    %212 = arith.addf %210, %211 : vector<8x64xf32>
    %213 = math.tanh %212 : vector<8x64xf32>
    %214 = arith.mulf %209, %213 : vector<8x64xf32>
    %c48_106 = arith.constant 48 : index
    %c0_107 = arith.constant 0 : index
    %215 = vector.load %arg10[%c48_106, %c0_107] : memref<64x64xf32, #tpu.memory_space<vmem>>, vector<8x64xf32>
    tpu.vector_store %arg10[%c48_106, %c0_107], %214 {strides = array<i32>} : memref<64x64xf32, #tpu.memory_space<vmem>>, vector<8x64xf32>,
    %c56 = arith.constant 56 : index
    %c0_108 = arith.constant 0 : index
    %216 = vector.load %arg9[%c56, %c0_108] : memref<64x256xf32, #tpu.memory_space<vmem>>, vector<8x256xf32>
    %c0_109 = arith.constant 0 : index
    %c0_110 = arith.constant 0 : index
    %217 = vector.load %arg5[%c0_109, %c0_110] : memref<64x256xf32, #tpu.memory_space<vmem>>, vector<64x256xf32>
    %cst_111 = arith.constant dense<0.000000e+00> : vector<8x256xf32>
    %218 = tpu.matmul %214, %217, %cst_111 {dimension_numbers = #tpu.dot_dimension_numbers<[1], [0], [0], [1], [0, 0, 1, 1], [], []>} : vector<8x64xf32>, vector<64x256xf32>, vector<8x256xf32> -> vector<8x256xf32>
    %219 = arith.addf %216, %218 : vector<8x256xf32>
    %220 = math.tanh %219 : vector<8x256xf32>
    %221 = vector.extract_strided_slice %220 {offsets = [0, 0], sizes = [8, 64], strides = [1, 1]} : vector<8x256xf32> to vector<8x64xf32>
    %cst_112 = arith.constant 5.000000e-01 : f32
    %222 = vector.broadcast %cst_112 : f32 to vector<8x64xf32>
    %223 = arith.mulf %222, %221 : vector<8x64xf32>
    %cst_113 = arith.constant 5.000000e-01 : f32
    %224 = vector.broadcast %cst_113 : f32 to vector<8x64xf32>
    %225 = arith.addf %223, %224 : vector<8x64xf32>
    %226 = vector.extract_strided_slice %220 {offsets = [0, 64], sizes = [8, 64], strides = [1, 1]} : vector<8x256xf32> to vector<8x64xf32>
    %cst_114 = arith.constant 5.000000e-01 : f32
    %227 = vector.broadcast %cst_114 : f32 to vector<8x64xf32>
    %228 = arith.mulf %227, %226 : vector<8x64xf32>
    %cst_115 = arith.constant 5.000000e-01 : f32
    %229 = vector.broadcast %cst_115 : f32 to vector<8x64xf32>
    %230 = arith.addf %228, %229 : vector<8x64xf32>
    %231 = vector.extract_strided_slice %220 {offsets = [0, 128], sizes = [8, 64], strides = [1, 1]} : vector<8x256xf32> to vector<8x64xf32>
    %232 = vector.extract_strided_slice %220 {offsets = [0, 192], sizes = [8, 64], strides = [1, 1]} : vector<8x256xf32> to vector<8x64xf32>
    %cst_116 = arith.constant 5.000000e-01 : f32
    %233 = vector.broadcast %cst_116 : f32 to vector<8x64xf32>
    %234 = arith.mulf %233, %232 : vector<8x64xf32>
    %cst_117 = arith.constant 5.000000e-01 : f32
    %235 = vector.broadcast %cst_117 : f32 to vector<8x64xf32>
    %236 = arith.addf %234, %235 : vector<8x64xf32>
    %237 = arith.mulf %230, %212 : vector<8x64xf32>
    %238 = arith.mulf %225, %231 : vector<8x64xf32>
    %239 = arith.addf %237, %238 : vector<8x64xf32>
    %240 = math.tanh %239 : vector<8x64xf32>
    %241 = arith.mulf %236, %240 : vector<8x64xf32>
    %c56_118 = arith.constant 56 : index
    %c0_119 = arith.constant 0 : index
    %242 = vector.load %arg10[%c56_118, %c0_119] : memref<64x64xf32, #tpu.memory_space<vmem>>, vector<8x64xf32>
    tpu.vector_store %arg10[%c56_118, %c0_119], %241 {strides = array<i32>} : memref<64x64xf32, #tpu.memory_space<vmem>>, vector<8x64xf32>,
    %c0_120 = arith.constant 0 : index
    %c0_121 = arith.constant 0 : index
    %243 = vector.load %arg10[%c0_120, %c0_121] : memref<64x64xf32, #tpu.memory_space<vmem>>, vector<64x64xf32>
    %c0_122 = arith.constant 0 : index
    %c0_123 = arith.constant 0 : index
    %244 = vector.load %arg6[%c0_122, %c0_123] : memref<64x32xf32, #tpu.memory_space<vmem>>, vector<64x32xf32>
    %cst_124 = arith.constant dense<0.000000e+00> : vector<64x32xf32>
    %245 = tpu.matmul %243, %244, %cst_124 {dimension_numbers = #tpu.dot_dimension_numbers<[1], [0], [0], [1], [0, 0, 1, 1], [], []>} : vector<64x64xf32>, vector<64x32xf32>, vector<64x32xf32> -> vector<64x32xf32>
    %246 = vector.broadcast %3 : vector<1x32xf32> to vector<64x32xf32>
    %247 = arith.addf %245, %246 : vector<64x32xf32>
    %cst_125 = arith.constant 0.000000e+00 : f32
    %248 = vector.broadcast %cst_125 : f32 to vector<64x32xf32>
    %249 = arith.maximumf %247, %248 : vector<64x32xf32>
    %250 = vector.broadcast %4 : vector<1x32xf32> to vector<64x32xf32>
    %251 = arith.mulf %249, %250 : vector<64x32xf32>
    %cst_126 = arith.constant dense<0.000000e+00> : vector<64xf32>
    %252 = vector.multi_reduction <add>, %251, %cst_126 [1] : vector<64x32xf32> to vector<64xf32>
    %253 = vector.shape_cast %252 : vector<64xf32> to vector<64x1xf32>
    %254 = vector.broadcast %5 : vector<1x1xf32> to vector<64x1xf32>
    %255 = arith.addf %253, %254 : vector<64x1xf32>
    %256 = math.tanh %255 : vector<64x1xf32>
    %257 = vector.shape_cast %256 : vector<64x1xf32> to vector<8x8x1xf32>
    %c0_127 = arith.constant 0 : index
    %c0_128 = arith.constant 0 : index
    %c0_129 = arith.constant 0 : index
    %258 = vector.load %arg8[%c0_127, %c0_128, %c0_129] : memref<8x8x1xf32, #tpu.memory_space<vmem>>, vector<8x8x1xf32>
    tpu.vector_store %arg8[%c0_127, %c0_128, %c0_129], %257 {strides = array<i32>} : memref<8x8x1xf32, #tpu.memory_space<vmem>>, vector<8x8x1xf32>,
    return
  }
  func.func @transform_0(%arg0: i32) -> (i32, i32, i32) {
    %c0_i32 = arith.constant 0 : i32
    %c0_i32_0 = arith.constant 0 : i32
    %c0_i32_1 = arith.constant 0 : i32
    return %c0_i32, %arg0, %c0_i32_0 : i32, i32, i32
  }
  func.func @transform_1(%arg0: i32) -> (i32, i32) {
    %c0_i32 = arith.constant 0 : i32
    %c0_i32_0 = arith.constant 0 : i32
    %c0_i32_1 = arith.constant 0 : i32
    return %c0_i32, %c0_i32_0 : i32, i32
  }
  func.func @transform_2(%arg0: i32) -> (i32, i32) {
    %c0_i32 = arith.constant 0 : i32
    %c0_i32_0 = arith.constant 0 : i32
    %c0_i32_1 = arith.constant 0 : i32
    return %c0_i32, %c0_i32_0 : i32, i32
  }
  func.func @transform_3(%arg0: i32) -> (i32, i32) {
    %c0_i32 = arith.constant 0 : i32
    %c0_i32_0 = arith.constant 0 : i32
    %c0_i32_1 = arith.constant 0 : i32
    return %c0_i32, %c0_i32_0 : i32, i32
  }
  func.func @transform_4(%arg0: i32) -> (i32, i32) {
    %c0_i32 = arith.constant 0 : i32
    %c0_i32_0 = arith.constant 0 : i32
    %c0_i32_1 = arith.constant 0 : i32
    return %c0_i32, %c0_i32_0 : i32, i32
  }
  func.func @transform_5(%arg0: i32) -> (i32, i32) {
    %c0_i32 = arith.constant 0 : i32
    %c0_i32_0 = arith.constant 0 : i32
    %c0_i32_1 = arith.constant 0 : i32
    return %c0_i32, %c0_i32_0 : i32, i32
  }
  func.func @transform_6(%arg0: i32) -> (i32, i32) {
    %c0_i32 = arith.constant 0 : i32
    %c0_i32_0 = arith.constant 0 : i32
    %c0_i32_1 = arith.constant 0 : i32
    return %c0_i32, %c0_i32_0 : i32, i32
  }
  func.func @transform_7(%arg0: i32) -> (i32, i32, i32) {
    %c0_i32 = arith.constant 0 : i32
    %c0_i32_0 = arith.constant 0 : i32
    %c0_i32_1 = arith.constant 0 : i32
    return %c0_i32, %arg0, %c0_i32_0 : i32, i32, i32
  }
}

</mosaic_0001>

<llo_original>
// kernel: tpu_custom_call.1
$region0: #{tpu_custom_call.1}
  #allocation0 [shape = 'u32[]', space=smem, size = 0x4, offset = 0x4, fixed_abs, tag = 'smem constant byte address 0x4 - core index']
  #allocation1 [shape = 'u32[72,128]{1,0:T(1,128)}', space=vmem, size = 0x9000, scoped, tag = 'internal scratch']
  #allocation2 [shape = 'f32[64,256]{1,0:T(8,128)}', space=vmem, size = 0x10000, scoped, tag = 'scratch operand']
  #allocation3 [shape = 'f32[64,64]{1,0:T(8,128)}', space=vmem, size = 0x8000, scoped, tag = 'scratch operand']
  %s0 = inlined_call_operand.vmem [shape: f32[8,16,6], index: 0, kind: input, shape index: {}]
  %s1 = inlined_call_operand.vmem [shape: f32[6,64], index: 1, kind: input, shape index: {}]
  %s2 = inlined_call_operand.vmem [shape: f32[64,128], index: 2, kind: input, shape index: {}]
  %s3 = inlined_call_operand.hbm [shape: f32[128,256], index: 3, kind: input, shape index: {}]
  %s4 = inlined_call_operand.vmem [shape: f32[64,256], index: 4, kind: input, shape index: {}]
  %s5 = inlined_call_operand.vmem [shape: f32[64,32], index: 5, kind: input, shape index: {}]
  %s6 = inlined_call_operand.vmem [shape: f32[1,896], index: 6, kind: input, shape index: {}]
  %s7 = inlined_call_operand.vmem [shape: f32[8,16,1], index: 7, kind: output, shape index: {}]
  %s8 = sld [smem:[#allocation0]]
  $region137: #{tpu_custom_call.1} parent=0
    _
  %s10 = ssub.s32 1, %s8
  %s11 = scalar_select 0, %s10, %s8
  $region1: #{tpu_custom_call.1} parent=0
    #allocation4 [shape = 'u8[65536]{0}', space=vmem, size = 0x10000, scoped, tag = 'input window, operand 0']
    #allocation5 [shape = 'u8[131072]{0}', space=vmem, size = 0x20000, scoped, tag = 'input window, operand 3, single buffered']
    #allocation6 [shape = 's32[2]{0}', space=sflag, size = 0x8, scoped, tag = 'scoped memory for tpu_custom_call.1']
    #allocation7 [shape = 'u8[65536]{0}', space=vmem, size = 0x10000, scoped, tag = 'output window, operand 0']
    %12 = vsyncpa [#allocation6], 0
    loop: start=0, step=1, limit=4
    $region2: #{tpu_custom_call.1} parent=1 // loop_pre_header
      _
    $region3: #{tpu_custom_call.1} parent=1 // loop_header
      %s14 = sphi 0, %s18
      %p15 = scmp.ge.s32.totalorder %s14, 4
      %s24 = sphi 0, %s26
      %s27 = sphi 0, %s24
      %s28 = sphi 0, %s27
      %s44 = sphi 0, %s28
      %s48 = sphi 0, %s48
      %s50 = sphi 0, %s48
      %s51 = sphi 0, %s50
      %s65 = sphi 0, %s51
      %s69 = sphi 0, %s69
      %s71 = sphi 0, %s69
      %s72 = sphi 0, %s71
      %s86 = sphi 0, %s72
      %s90 = sphi 0, %s90
      %s92 = sphi 0, %s90
      %s93 = sphi 0, %s92
      %s107 = sphi 0, %s93
      %s111 = sphi 0, %s111
      %s113 = sphi 0, %s111
      %s114 = sphi 0, %s113
      %s128 = sphi 0, %s114
      %s132 = sphi 0, %s132
      %s134 = sphi 0, %s132
      %s135 = sphi 0, %s134
      %s149 = sphi 0, %s135
      %s153 = sphi 0, %s153
      %s155 = sphi 0, %s153
      %s156 = sphi 0, %s155
      %s170 = sphi 0, %s156
      %s176 = sphi 0, %s178
      %s179 = sphi 0, %s176
      %s180 = sphi 0, %s179
      %s196 = sphi 0, %s180
    $region4: #{tpu_custom_call.1} parent=1 // loop_header_branch
      %17 = sbr.rel (%p15) target = $region8
    $region5: #{tpu_custom_call.1} parent=1 // loop_body
      %s19 = ssub.s32 %s14, 1
      %s20 = ssub.s32 %s14, 2
      %s21 = sadd.s32 %s14, 1
      %s22 = ssub.s32 %s14, %s21
      %p23 = scmp.eq.s32.totalorder %s22, 0
      %s25 = sadd.s32 %s24, 1
      %s26 = scalar_select %p23, %s24, %s25
      %p29 = pneg %p23
      %p30 = scmp.eq.s32.totalorder %s14, 1
      %p31 = por %p29, %p30
      %p32 = scmp.ne.s32.totalorder %s24, %s27
      %p33 = scmp.eq.s32.totalorder %s14, 0
      %p34 = por %p32, %p33
      %p35 = scmp.ne.s32.totalorder %s24, %s27
      %p36 = scmp.eq.s32.totalorder %s19, 1
      %p37 = por %p35, %p36
      %p38 = scmp.ne.s32.totalorder %s27, %s28
      %p39 = scmp.eq.s32.totalorder %s19, 0
      %p40 = por %p38, %p39
      %p41 = scmp.ne.s32.totalorder %s27, %s28
      %p42 = scmp.eq.s32.totalorder %s20, 1
      %p43 = por %p41, %p42
      %p45 = scmp.ne.s32.totalorder %s28, %s44
      %p46 = scmp.eq.s32.totalorder %s20, 0
      %p47 = por %p45, %p46
      %s49 = sadd.s32 %s48, 1
      %p52 = scmp.eq.s32.totalorder %s14, 1
      %p53 = scmp.ne.s32.totalorder %s48, %s50
      %p54 = scmp.eq.s32.totalorder %s14, 0
      %p55 = por %p53, %p54
      %p56 = scmp.ne.s32.totalorder %s48, %s50
      %p57 = scmp.eq.s32.totalorder %s19, 1
      %p58 = por %p56, %p57
      %p59 = scmp.ne.s32.totalorder %s50, %s51
      %p60 = scmp.eq.s32.totalorder %s19, 0
      %p61 = por %p59, %p60
      %p62 = scmp.ne.s32.totalorder %s50, %s51
      %p63 = scmp.eq.s32.totalorder %s20, 1
      %p64 = por %p62, %p63
      %p66 = scmp.ne.s32.totalorder %s51, %s65
      %p67 = scmp.eq.s32.totalorder %s20, 0
      %p68 = por %p66, %p67
      %s70 = sadd.s32 %s69, 1
      %p73 = scmp.eq.s32.totalorder %s14, 1
      %p74 = scmp.ne.s32.totalorder %s69, %s71
      %p75 = scmp.eq.s32.totalorder %s14, 0
      %p76 = por %p74, %p75
      %p77 = scmp.ne.s32.totalorder %s69, %s71
      %p78 = scmp.eq.s32.totalorder %s19, 1
      %p79 = por %p77, %p78
      %p80 = scmp.ne.s32.totalorder %s71, %s72
      %p81 = scmp.eq.s32.totalorder %s19, 0
      %p82 = por %p80, %p81
      %p83 = scmp.ne.s32.totalorder %s71, %s72
      %p84 = scmp.eq.s32.totalorder %s20, 1
      %p85 = por %p83, %p84
      %p87 = scmp.ne.s32.totalorder %s72, %s86
      %p88 = scmp.eq.s32.totalorder %s20, 0
      %p89 = por %p87, %p88
      %s91 = sadd.s32 %s90, 1
      %p94 = scmp.eq.s32.totalorder %s14, 1
      %p95 = scmp.ne.s32.totalorder %s90, %s92
      %p96 = scmp.eq.s32.totalorder %s14, 0
      %p97 = por %p95, %p96
      %p98 = scmp.ne.s32.totalorder %s90, %s92
      %p99 = scmp.eq.s32.totalorder %s19, 1
      %p100 = por %p98, %p99
      %p101 = scmp.ne.s32.totalorder %s92, %s93
      %p102 = scmp.eq.s32.totalorder %s19, 0
      %p103 = por %p101, %p102
      %p104 = scmp.ne.s32.totalorder %s92, %s93
      %p105 = scmp.eq.s32.totalorder %s20, 1
      %p106 = por %p104, %p105
      %p108 = scmp.ne.s32.totalorder %s93, %s107
      %p109 = scmp.eq.s32.totalorder %s20, 0
      %p110 = por %p108, %p109
      %s112 = sadd.s32 %s111, 1
      %p115 = scmp.eq.s32.totalorder %s14, 1
      %p116 = scmp.ne.s32.totalorder %s111, %s113
      %p117 = scmp.eq.s32.totalorder %s14, 0
      %p118 = por %p116, %p117
      %p119 = scmp.ne.s32.totalorder %s111, %s113
      %p120 = scmp.eq.s32.totalorder %s19, 1
      %p121 = por %p119, %p120
      %p122 = scmp.ne.s32.totalorder %s113, %s114
      %p123 = scmp.eq.s32.totalorder %s19, 0
      %p124 = por %p122, %p123
      %p125 = scmp.ne.s32.totalorder %s113, %s114
      %p126 = scmp.eq.s32.totalorder %s20, 1
      %p127 = por %p125, %p126
      %p129 = scmp.ne.s32.totalorder %s114, %s128
      %p130 = scmp.eq.s32.totalorder %s20, 0
      %p131 = por %p129, %p130
      %s133 = sadd.s32 %s132, 1
      %p136 = scmp.eq.s32.totalorder %s14, 1
      %p137 = scmp.ne.s32.totalorder %s132, %s134
      %p138 = scmp.eq.s32.totalorder %s14, 0
      %p139 = por %p137, %p138
      %p140 = scmp.ne.s32.totalorder %s132, %s134
      %p141 = scmp.eq.s32.totalorder %s19, 1
      %p142 = por %p140, %p141
      %p143 = scmp.ne.s32.totalorder %s134, %s135
      %p144 = scmp.eq.s32.totalorder %s19, 0
      %p145 = por %p143, %p144
      %p146 = scmp.ne.s32.totalorder %s134, %s135
      %p147 = scmp.eq.s32.totalorder %s20, 1
      %p148 = por %p146, %p147
      %p150 = scmp.ne.s32.totalorder %s135, %s149
      %p151 = scmp.eq.s32.totalorder %s20, 0
      %p152 = por %p150, %p151
      %s154 = sadd.s32 %s153, 1
      %p157 = scmp.eq.s32.totalorder %s14, 1
      %p158 = scmp.ne.s32.totalorder %s153, %s155
      %p159 = scmp.eq.s32.totalorder %s14, 0
      %p160 = por %p158, %p159
      %p161 = scmp.ne.s32.totalorder %s153, %s155
      %p162 = scmp.eq.s32.totalorder %s19, 1
      %p163 = por %p161, %p162
      %p164 = scmp.ne.s32.totalorder %s155, %s156
      %p165 = scmp.eq.s32.totalorder %s19, 0
      %p166 = por %p164, %p165
      %p167 = scmp.ne.s32.totalorder %s155, %s156
      %p168 = scmp.eq.s32.totalorder %s20, 1
      %p169 = por %p167, %p168
      %p171 = scmp.ne.s32.totalorder %s156, %s170
      %p172 = scmp.eq.s32.totalorder %s20, 0
      %p173 = por %p171, %p172
      %s174 = ssub.s32 %s14, %s21
      %p175 = scmp.eq.s32.totalorder %s174, 0
      %s177 = sadd.s32 %s176, 1
      %s178 = scalar_select %p175, %s176, %s177
      %p181 = pneg %p175
      %p182 = scmp.eq.s32.totalorder %s14, 1
      %p183 = por %p181, %p182
      %p184 = scmp.ne.s32.totalorder %s176, %s179
      %p185 = scmp.eq.s32.totalorder %s14, 0
      %p186 = por %p184, %p185
      %p187 = scmp.ne.s32.totalorder %s176, %s179
      %p188 = scmp.eq.s32.totalorder %s19, 1
      %p189 = por %p187, %p188
      %p190 = scmp.ne.s32.totalorder %s179, %s180
      %p191 = scmp.eq.s32.totalorder %s19, 0
      %p192 = por %p190, %p191
      %p193 = scmp.ne.s32.totalorder %s179, %s180
      %p194 = scmp.eq.s32.totalorder %s20, 1
      %p195 = por %p193, %p194
      %p197 = scmp.ne.s32.totalorder %s180, %s196
      %p198 = scmp.eq.s32.totalorder %s20, 0
      %p199 = por %p197, %p198
      %p200 = scmp.le.s32.totalorder 1, %s14
      %p201 = scmp.lt.s32.totalorder %s14, 3
      %p202 = pnand %p200, %p201
      %p203 = pneg %p202
      // Predicated region
      $region9: #{tpu_custom_call.1} parent=5 // pred_check
        _
      $region10: #{tpu_custom_call.1} parent=5 // pred_check_branch
        %205 = sbr.rel (%p202) target = $region12
      $region11: #{tpu_custom_call.1} parent=5 // pred_region
        %s206 = ssub.s32 %s14, 1
        // Predicated region
        $region13: #{tpu_custom_call.1} parent=11 // pred_check
          %p207 = pneg %p61
        $region14: #{tpu_custom_call.1} parent=11 // pred_check_branch
          %209 = sbr.rel (%p207) target = $region16
        $region15: #{tpu_custom_call.1} parent=11 // pred_region
          _
        $region16: #{tpu_custom_call.1} parent=11 // pred_fallthru
          _
        // Predicated region
        $region17: #{tpu_custom_call.1} parent=11 // pred_check
          %p210 = pneg %p82
        $region18: #{tpu_custom_call.1} parent=11 // pred_check_branch
          %212 = sbr.rel (%p210) target = $region20
        $region19: #{tpu_custom_call.1} parent=11 // pred_region
          _
        $region20: #{tpu_custom_call.1} parent=11 // pred_fallthru
          _
        // Predicated region
        $region21: #{tpu_custom_call.1} parent=11 // pred_check
          %p213 = pneg %p103
        $region22: #{tpu_custom_call.1} parent=11 // pred_check_branch
          %215 = sbr.rel (%p213) target = $region24
        $region23: #{tpu_custom_call.1} parent=11 // pred_region
          %217 = vsyncadd [#allocation6], 0
          %s218 = sshll.u32 %s3, 4
          %s219 = int_to_ptr.hbm [resolvable:$true] %s218
          %s220 = sshll.u32 [#allocation5], 4
          %s221 = int_to_ptr.vmem [resolvable:$true] %s220
          %226 = dma.hbm_to_vmem [thread:$0]  %s219, 4096, %s221, [#allocation6], 256, 256, 16
        $region24: #{tpu_custom_call.1} parent=11 // pred_fallthru
          _
        // Predicated region
        $region25: #{tpu_custom_call.1} parent=11 // pred_check
          %p227 = pneg %p124
        $region26: #{tpu_custom_call.1} parent=11 // pred_check_branch
          %229 = sbr.rel (%p227) target = $region28
        $region27: #{tpu_custom_call.1} parent=11 // pred_region
          _
        $region28: #{tpu_custom_call.1} parent=11 // pred_fallthru
          _
        // Predicated region
        $region29: #{tpu_custom_call.1} parent=11 // pred_check
          %p230 = pneg %p145
        $region30: #{tpu_custom_call.1} parent=11 // pred_check_branch
          %232 = sbr.rel (%p230) target = $region32
        $region31: #{tpu_custom_call.1} parent=11 // pred_region
          _
        $region32: #{tpu_custom_call.1} parent=11 // pred_fallthru
          _
        // Predicated region
        $region33: #{tpu_custom_call.1} parent=11 // pred_check
          %p233 = pneg %p166
        $region34: #{tpu_custom_call.1} parent=11 // pred_check_branch
          %235 = sbr.rel (%p233) target = $region36
        $region35: #{tpu_custom_call.1} parent=11 // pred_region
          _
        $region36: #{tpu_custom_call.1} parent=11 // pred_fallthru
          _
      $region12: #{tpu_custom_call.1} parent=5 // pred_fallthru
        _
      %p236 = scmp.lt.s32.totalorder %s14, 2
      // Predicated region
      $region37: #{tpu_custom_call.1} parent=5 // pred_check
        %p237 = pneg %p236
      $region38: #{tpu_custom_call.1} parent=5 // pred_check_branch
        %239 = sbr.rel (%p237) target = $region40
      $region39: #{tpu_custom_call.1} parent=5 // pred_region
        // Predicated region
        $region41: #{tpu_custom_call.1} parent=39 // pred_check
          %p240 = pneg %p34
        $region42: #{tpu_custom_call.1} parent=39 // pred_check_branch
          %242 = sbr.rel (%p240) target = $region44
        $region43: #{tpu_custom_call.1} parent=39 // pred_region
          %s243 = sand.u32 %s24, 1
          %s244 = sand.u32 %s24, 1
          %s245 = smul.addr %s244, 64
          %s246 = scalar_lea.vmem [#allocation4], %s245
          %s247 = smul.addr %s14, 8
          %s248 = scalar_lea.vmem %s0, %s247
          // Predicated region
          $region45: #{tpu_custom_call.1} parent=43 // pred_check
            _
          $region46: #{tpu_custom_call.1} parent=43 // pred_check_branch
            %250 = sbr.rel (0) target = $region48
          $region47: #{tpu_custom_call.1} parent=43 // pred_region
            // Predicated region
            $region49: #{tpu_custom_call.1} parent=47 // pred_check
              _
            $region50: #{tpu_custom_call.1} parent=47 // pred_check_branch
              %252 = sbr.rel (0) target = $region52
            $region51: #{tpu_custom_call.1} parent=47 // pred_region
              // Predicated region
              $region64: #{tpu_custom_call.1} parent=51 // pred_check
                _
              $region65: #{tpu_custom_call.1} parent=51 // pred_check_branch
                %282 = sbr.rel (0) target = $region67
              $region66: #{tpu_custom_call.1} parent=51 // pred_region
                loop: start=0, step=1, limit=1
                $region68: #{tpu_custom_call.1} parent=66 // loop_pre_header
                  _
                $region69: #{tpu_custom_call.1} parent=66 // loop_header
                  %s284 = sphi 0, %s288
                  %p285 = scmp.ge.s32.totalorder %s284, 1
                  %s289 = sphi %s248, %s248
                  %s290 = sphi %s246, %s246
                $region70: #{tpu_custom_call.1} parent=66 // loop_header_branch
                  %287 = sbr.rel (%p285) target = $region74
                $region71: #{tpu_custom_call.1} parent=66 // loop_body
                  %v291 = vld [vmem:[%s289] sm:$0xff]
                  %292 = vst [vmem:[%s290] sm:$0xff] %v291
                  %v293 = vld [vmem:[%s289 + $0x10] sm:$0xff]
                  %294 = vst [vmem:[%s290 + $0x8] sm:$0xff] %v293
                  %v295 = vld [vmem:[%s289 + $0x20] sm:$0xff]
                  %296 = vst [vmem:[%s290 + $0x10] sm:$0xff] %v295
                  %v297 = vld [vmem:[%s289 + $0x30] sm:$0xff]
                  %298 = vst [vmem:[%s290 + $0x18] sm:$0xff] %v297
                  %v299 = vld [vmem:[%s289 + $0x40] sm:$0xff]
                  %300 = vst [vmem:[%s290 + $0x20] sm:$0xff] %v299
                  %v301 = vld [vmem:[%s289 + $0x50] sm:$0xff]
                  %302 = vst [vmem:[%s290 + $0x28] sm:$0xff] %v301
                  %v303 = vld [vmem:[%s289 + $0x60] sm:$0xff]
                  %304 = vst [vmem:[%s290 + $0x30] sm:$0xff] %v303
                  %v305 = vld [vmem:[%s289 + $0x70] sm:$0xff]
                  %306 = vst [vmem:[%s290 + $0x38] sm:$0xff] %v305
                $region72: #{tpu_custom_call.1} parent=66 // loop_footer
                  %s288 = sadd.s32 1, %s284
                $region73: #{tpu_custom_call.1} parent=66 // loop_footer_branch
                  %283 = sbr.rel target = $region69
                $region74: #{tpu_custom_call.1} parent=66 // loop_exit
                  _
              $region67: #{tpu_custom_call.1} parent=51 // pred_fallthru
                _
              // Predicated region
              $region75: #{tpu_custom_call.1} parent=51 // pred_check
                _
              $region76: #{tpu_custom_call.1} parent=51 // pred_check_branch
                %308 = sbr.rel target = $region78
              $region77: #{tpu_custom_call.1} parent=51 // pred_region
                _
              $region78: #{tpu_custom_call.1} parent=51 // pred_fallthru
                _
            $region52: #{tpu_custom_call.1} parent=47 // pred_fallthru
              _
            // Predicated region
            $region53: #{tpu_custom_call.1} parent=47 // pred_check
              _
            $region54: #{tpu_custom_call.1} parent=47 // pred_check_branch
              %254 = sbr.rel target = $region56
            $region55: #{tpu_custom_call.1} parent=47 // pred_region
              %s256 = ssub.s32 256, 1
              loop: start=0, step=1, limit=1
              $region57: #{tpu_custom_call.1} parent=55 // loop_pre_header
                _
              $region58: #{tpu_custom_call.1} parent=55 // loop_header
                %s258 = sphi 0, %s262
                %p259 = scmp.ge.s32.totalorder %s258, 1
                %s263 = sphi %s248, %s248
                %s264 = sphi %s246, %s246
              $region59: #{tpu_custom_call.1} parent=55 // loop_header_branch
                %261 = sbr.rel (%p259) target = $region63
              $region60: #{tpu_custom_call.1} parent=55 // loop_body
                %v265 = vld [vmem:[%s263] sm:%s256]
                %266 = vst [vmem:[%s264] sm:%s256] %v265
                %v267 = vld [vmem:[%s263 + $0x10] sm:%s256]
                %268 = vst [vmem:[%s264 + $0x8] sm:%s256] %v267
                %v269 = vld [vmem:[%s263 + $0x20] sm:%s256]
                %270 = vst [vmem:[%s264 + $0x10] sm:%s256] %v269
                %v271 = vld [vmem:[%s263 + $0x30] sm:%s256]
                %272 = vst [vmem:[%s264 + $0x18] sm:%s256] %v271
                %v273 = vld [vmem:[%s263 + $0x40] sm:%s256]
                %274 = vst [vmem:[%s264 + $0x20] sm:%s256] %v273
                %v275 = vld [vmem:[%s263 + $0x50] sm:%s256]
                %276 = vst [vmem:[%s264 + $0x28] sm:%s256] %v275
                %v277 = vld [vmem:[%s263 + $0x60] sm:%s256]
                %278 = vst [vmem:[%s264 + $0x30] sm:%s256] %v277
                %v279 = vld [vmem:[%s263 + $0x70] sm:%s256]
                %280 = vst [vmem:[%s264 + $0x38] sm:%s256] %v279
              $region61: #{tpu_custom_call.1} parent=55 // loop_footer
                %s262 = sadd.s32 1, %s258
              $region62: #{tpu_custom_call.1} parent=55 // loop_footer_branch
                %257 = sbr.rel target = $region58
              $region63: #{tpu_custom_call.1} parent=55 // loop_exit
                _
            $region56: #{tpu_custom_call.1} parent=47 // pred_fallthru
              _
          $region48: #{tpu_custom_call.1} parent=43 // pred_fallthru
            _
          %309 = vnop
        $region44: #{tpu_custom_call.1} parent=39 // pred_fallthru
          _
      $region40: #{tpu_custom_call.1} parent=5 // pred_fallthru
        _
      %p310 = scmp.le.s32.totalorder 1, %s14
      %p311 = scmp.lt.s32.totalorder %s14, 3
      %p312 = pnand %p310, %p311
      %p313 = pneg %p312
      // Predicated region
      $region79: #{tpu_custom_call.1} parent=5 // pred_check
        _
      $region80: #{tpu_custom_call.1} parent=5 // pred_check_branch
        %315 = sbr.rel (%p312) target = $region82
      $region81: #{tpu_custom_call.1} parent=5 // pred_region
        %s316 = ssub.s32 %s14, 1
        %s317 = sand.u32 %s27, 1
        %s318 = sand.u32 %s27, 1
        %s319 = smul.addr %s318, 64
        %s320 = scalar_lea.vmem [#allocation4], %s319
        // Predicated region
        $region83: #{tpu_custom_call.1} parent=81 // pred_check
          %p321 = pneg %p40
        $region84: #{tpu_custom_call.1} parent=81 // pred_check_branch
          %323 = sbr.rel (%p321) target = $region86
        $region85: #{tpu_custom_call.1} parent=81 // pred_region
          _
        $region86: #{tpu_custom_call.1} parent=81 // pred_fallthru
          _
        // Predicated region
        $region87: #{tpu_custom_call.1} parent=81 // pred_check
          %p324 = pneg %p103
        $region88: #{tpu_custom_call.1} parent=81 // pred_check_branch
          %326 = sbr.rel (%p324) target = $region90
        $region89: #{tpu_custom_call.1} parent=81 // pred_region
          %328 = dma.done [#allocation6], 4096
        $region90: #{tpu_custom_call.1} parent=81 // pred_fallthru
          _
        %s329 = sand.u32 %s27, 1
        %s330 = sand.u32 %s27, 1
        %s331 = smul.addr %s330, 64
        %s332 = scalar_lea.vmem [#allocation4], %s331
        %p333 = pneg %p40
        %p334 = pneg %p37
        %p335 = pneg %p61
        %p336 = pneg %p58
        %p337 = pneg %p82
        %p338 = pneg %p79
        %p339 = pneg %p103
        %p340 = pneg %p100
        %p341 = pneg %p124
        %p342 = pneg %p121
        %p343 = pneg %p145
        %p344 = pneg %p142
        %p345 = pneg %p166
        %p346 = pneg %p163
        %p347 = pneg %p192
        %p348 = pneg %p189
        %s349 = sand.u32 %s179, 1
        %s350 = sand.u32 %s179, 1
        %s351 = smul.addr %s350, 64
        %s352 = scalar_lea.vmem [#allocation7], %s351
        %v353 = vld [vmem:[%s6] sm:$0x1]
        %v354 = vld [vmem:[%s6 + $0x1] sm:$0x1]
        %v355 = vld [vmem:[%s6 + $0x2] sm:$0x3]
        %v356 = vld [vmem:[%s6 + $0x4] sm:$0x1]
        %v357 = vld [vmem:[%s6 + $0x5] sm:$0x1]
        %v358 = vld [vmem:[%s6 + $0x6] sm:$0x1]
        %v359 = vld [vmem:[%s320] sm:$0xff]
        %v360 = vld [vmem:[%s320 + $0x8] sm:$0xff]
        %v361 = vld [vmem:[%s320 + $0x10] sm:$0xff]
        %v362 = vld [vmem:[%s320 + $0x18] sm:$0xff]
        %v363 = vld [vmem:[%s320 + $0x20] sm:$0xff]
        %v364 = vld [vmem:[%s320 + $0x28] sm:$0xff]
        %v365 = vld [vmem:[%s320 + $0x30] sm:$0xff]
        %v366 = vld [vmem:[%s320 + $0x38] sm:$0xff]
        %v367 = vld [vmem:[%s1] sm:$0x3f]
        %v369 = vperm.slane %v353, 0
        %vm371 = vcmask 48128
        %v373 = vsel %vm371, %v359, 0
        %v376 = vsel %vm371, %v360, 0
        %v379 = vsel %vm371, %v361, 0
        %v382 = vsel %vm371, %v362, 0
        %v385 = vsel %vm371, %v363, 0
        %v388 = vsel %vm371, %v364, 0
        %v391 = vsel %vm371, %v365, 0
        %v394 = vsel %vm371, %v366, 0
        %vm396 = vcmask 1045504
        %v398 = vsel %vm396, %v367, 0
        %400 = vmatpush.msra.mxu0 0.0
        %401 = vmatpush.msra.mxu0 0.0
        %402 = vmatpush.msra.mxu0 0.0
        %403 = vmatpush.msra.mxu0 0.0
        %404 = vmatpush.msra.mxu0 0.0
        %405 = vmatpush.msra.mxu0 0.0
        %406 = vmatpush.msra.mxu0 0.0
        %407 = vmatpush.msra.mxu0 0.0
        %408 = vmatpush.msra.mxu0 0.0
        %409 = vmatpush.msra.mxu0 0.0
        %410 = vmatpush.msra.mxu0 0.0
        %411 = vmatpush.msra.mxu0 0.0
        %412 = vmatpush.msra.mxu0 0.0
        %413 = vmatpush.msra.mxu0 0.0
        %414 = vmatpush.msra.mxu0 0.0
        %415 = vmatpush.msra.mxu0 %v398
        %416 = vmatmul.f32.gmra.mxu0 %v373
        %v417 = vpop.f32.mrf.mxu0
        %v418 = vadd.f32 %v369, %v417
        %419 = vmatmul.f32.gmra.mxu0 %v376
        %v420 = vpop.f32.mrf.mxu0
        %v421 = vadd.f32 %v369, %v420
        %422 = vmatmul.f32.gmra.mxu0 %v379
        %v423 = vpop.f32.mrf.mxu0
        %v424 = vadd.f32 %v369, %v423
        %425 = vmatmul.f32.gmra.mxu0 %v382
        %v426 = vpop.f32.mrf.mxu0
        %v427 = vadd.f32 %v369, %v426
        %428 = vmatmul.f32.gmra.mxu0 %v385
        %v429 = vpop.f32.mrf.mxu0
        %v430 = vadd.f32 %v369, %v429
        %431 = vmatmul.f32.gmra.mxu0 %v388
        %v432 = vpop.f32.mrf.mxu0
        %v433 = vadd.f32 %v369, %v432
        %434 = vmatmul.f32.gmra.mxu0 %v391
        %v435 = vpop.f32.mrf.mxu0
        %v436 = vadd.f32 %v369, %v435
        %437 = vmatmul.f32.gmra.mxu0 %v394
        %v438 = vpop.f32.mrf.mxu0
        %v439 = vadd.f32 %v369, %v438
        %440 = vdwg.mxu0
        %v441 = vmax.f32 %v418, 0.0
        %v442 = vmax.f32 %v421, 0.0
        %v443 = vmax.f32 %v424, 0.0
        %v444 = vmax.f32 %v427, 0.0
        %v445 = vmax.f32 %v430, 0.0
        %v446 = vmax.f32 %v433, 0.0
        %v447 = vmax.f32 %v436, 0.0
        %v448 = vmax.f32 %v439, 0.0
        %v449 = vld [vmem:[%s2] sm:$0xff]
        %v450 = vld [vmem:[%s2 + $0x8] sm:$0xff]
        %v451 = vld [vmem:[%s2 + $0x10] sm:$0xff]
        %v452 = vld [vmem:[%s2 + $0x18] sm:$0xff]
        %v453 = vld [vmem:[%s2 + $0x20] sm:$0xff]
        %v454 = vld [vmem:[%s2 + $0x28] sm:$0xff]
        %v455 = vld [vmem:[%s2 + $0x30] sm:$0xff]
        %v456 = vld [vmem:[%s2 + $0x38] sm:$0xff]
        %v458 = vperm.slane %v354, 0
        %vm460 = vcmask 523264
        %v462 = vsel %vm460, %v441, 0
        %v465 = vsel %vm460, %v442, 0
        %v468 = vsel %vm460, %v443, 0
        %v471 = vsel %vm460, %v444, 0
        %v474 = vsel %vm460, %v445, 0
        %v477 = vsel %vm460, %v446, 0
        %v480 = vsel %vm460, %v447, 0
        %v483 = vsel %vm460, %v448, 0
        %485 = vmatpush.msra.mxu0 0.0
        %486 = vmatpush.msra.mxu0 0.0
        %487 = vmatpush.msra.mxu0 0.0
        %488 = vmatpush.msra.mxu0 0.0
        %489 = vmatpush.msra.mxu0 0.0
        %490 = vmatpush.msra.mxu0 0.0
        %491 = vmatpush.msra.mxu0 0.0
        %492 = vmatpush.msra.mxu0 0.0
        %493 = vmatpush.msra.mxu0 %v456
        %494 = vmatpush.msra.mxu0 %v455
        %495 = vmatpush.msra.mxu0 %v454
        %496 = vmatpush.msra.mxu0 %v453
        %497 = vmatpush.msra.mxu0 %v452
        %498 = vmatpush.msra.mxu0 %v451
        %499 = vmatpush.msra.mxu0 %v450
        %500 = vmatpush.msra.mxu0 %v449
        %501 = vmatmul.f32.gmra.mxu0 %v462
        %v502 = vpop.f32.mrf.mxu0
        %v503 = vadd.f32 %v458, %v502
        %504 = vmatmul.f32.gmra.mxu0 %v465
        %v505 = vpop.f32.mrf.mxu0
        %v506 = vadd.f32 %v458, %v505
        %507 = vmatmul.f32.gmra.mxu0 %v468
        %v508 = vpop.f32.mrf.mxu0
        %v509 = vadd.f32 %v458, %v508
        %510 = vmatmul.f32.gmra.mxu0 %v471
        %v511 = vpop.f32.mrf.mxu0
        %v512 = vadd.f32 %v458, %v511
        %513 = vmatmul.f32.gmra.mxu0 %v474
        %v514 = vpop.f32.mrf.mxu0
        %v515 = vadd.f32 %v458, %v514
        %516 = vmatmul.f32.gmra.mxu0 %v477
        %v517 = vpop.f32.mrf.mxu0
        %v518 = vadd.f32 %v458, %v517
        %519 = vmatmul.f32.gmra.mxu0 %v480
        %v520 = vpop.f32.mrf.mxu0
        %v521 = vadd.f32 %v458, %v520
        %522 = vmatmul.f32.gmra.mxu0 %v483
        %v523 = vpop.f32.mrf.mxu0
        %v524 = vadd.f32 %v458, %v523
        %525 = vdwg.mxu0
        %v526 = vmax.f32 %v503, 0.0
        %v527 = vmax.f32 %v506, 0.0
        %v528 = vmax.f32 %v509, 0.0
        %v529 = vmax.f32 %v512, 0.0
        %v530 = vmax.f32 %v515, 0.0
        %v531 = vmax.f32 %v518, 0.0
        %v532 = vmax.f32 %v521, 0.0
        %v533 = vmax.f32 %v524, 0.0
        %v534 = vld [vmem:[#allocation5] sm:$0xff]
        %v535 = vld [vmem:[#allocation5 + $0x8] sm:$0xff]
        %v536 = vld [vmem:[#allocation5 + $0x10] sm:$0xff]
        %v537 = vld [vmem:[#allocation5 + $0x18] sm:$0xff]
        %v538 = vld [vmem:[#allocation5 + $0x20] sm:$0xff]
        %v539 = vld [vmem:[#allocation5 + $0x28] sm:$0xff]
        %v540 = vld [vmem:[#allocation5 + $0x30] sm:$0xff]
        %v541 = vld [vmem:[#allocation5 + $0x38] sm:$0xff]
        %v542 = vld [vmem:[#allocation5 + $0x40] sm:$0xff]
        %v543 = vld [vmem:[#allocation5 + $0x48] sm:$0xff]
        %v544 = vld [vmem:[#allocation5 + $0x50] sm:$0xff]
        %v545 = vld [vmem:[#allocation5 + $0x58] sm:$0xff]
        %v546 = vld [vmem:[#allocation5 + $0x60] sm:$0xff]
        %v547 = vld [vmem:[#allocation5 + $0x68] sm:$0xff]
        %v548 = vld [vmem:[#allocation5 + $0x70] sm:$0xff]
        %v549 = vld [vmem:[#allocation5 + $0x78] sm:$0xff]
        %v550 = vld [vmem:[#allocation5 + $0x80] sm:$0xff]
        %v551 = vld [vmem:[#allocation5 + $0x88] sm:$0xff]
        %v552 = vld [vmem:[#allocation5 + $0x90] sm:$0xff]
        %v553 = vld [vmem:[#allocation5 + $0x98] sm:$0xff]
        %v554 = vld [vmem:[#allocation5 + $0xa0] sm:$0xff]
        %v555 = vld [vmem:[#allocation5 + $0xa8] sm:$0xff]
        %v556 = vld [vmem:[#allocation5 + $0xb0] sm:$0xff]
        %v557 = vld [vmem:[#allocation5 + $0xb8] sm:$0xff]
        %v558 = vld [vmem:[#allocation5 + $0xc0] sm:$0xff]
        %v559 = vld [vmem:[#allocation5 + $0xc8] sm:$0xff]
        %v560 = vld [vmem:[#allocation5 + $0xd0] sm:$0xff]
        %v561 = vld [vmem:[#allocation5 + $0xd8] sm:$0xff]
        %v562 = vld [vmem:[#allocation5 + $0xe0] sm:$0xff]
        %v563 = vld [vmem:[#allocation5 + $0xe8] sm:$0xff]
        %v564 = vld [vmem:[#allocation5 + $0xf0] sm:$0xff]
        %v565 = vld [vmem:[#allocation5 + $0xf8] sm:$0xff]
        %v567 = vperm.slane %v355, 0
        %v568 = vperm.slane %v355, 1
        %571 = vmatpush.msra.mxu0 %v564
        %572 = vmatpush.msra.mxu0 %v562
        %573 = vmatpush.msra.mxu0 %v560
        %574 = vmatpush.msra.mxu0 %v558
        %575 = vmatpush.msra.mxu0 %v556
        %576 = vmatpush.msra.mxu0 %v554
        %577 = vmatpush.msra.mxu0 %v552
        %578 = vmatpush.msra.mxu0 %v550
        %579 = vmatpush.msra.mxu0 %v548
        %580 = vmatpush.msra.mxu0 %v546
        %581 = vmatpush.msra.mxu0 %v544
        %582 = vmatpush.msra.mxu0 %v542
        %583 = vmatpush.msra.mxu0 %v540
        %584 = vmatpush.msra.mxu0 %v538
        %585 = vmatpush.msra.mxu0 %v536
        %586 = vmatpush.msra.mxu0 %v534
        %587 = vmatmul.f32.gmra.mxu0 %v526
        %v588 = vpop.f32.mrf.mxu0
        %v589 = vadd.f32 %v567, %v588
        %590 = vmatmul.f32.gmra.mxu0 %v527
        %v591 = vpop.f32.mrf.mxu0
        %v592 = vadd.f32 %v567, %v591
        %593 = vmatmul.f32.gmra.mxu0 %v528
        %v594 = vpop.f32.mrf.mxu0
        %v595 = vadd.f32 %v567, %v594
        %596 = vmatmul.f32.gmra.mxu0 %v529
        %v597 = vpop.f32.mrf.mxu0
        %v598 = vadd.f32 %v567, %v597
        %599 = vmatmul.f32.gmra.mxu0 %v530
        %v600 = vpop.f32.mrf.mxu0
        %v601 = vadd.f32 %v567, %v600
        %602 = vmatmul.f32.gmra.mxu0 %v531
        %v603 = vpop.f32.mrf.mxu0
        %v604 = vadd.f32 %v567, %v603
        %605 = vmatmul.f32.gmra.mxu0 %v532
        %v606 = vpop.f32.mrf.mxu0
        %v607 = vadd.f32 %v567, %v606
        %608 = vmatmul.f32.gmra.mxu0 %v533
        %v609 = vpop.f32.mrf.mxu0
        %v610 = vadd.f32 %v567, %v609
        %611 = vdwg.mxu0
        %612 = vmatpush.msra.mxu0 %v565
        %613 = vmatpush.msra.mxu0 %v563
        %614 = vmatpush.msra.mxu0 %v561
        %615 = vmatpush.msra.mxu0 %v559
        %616 = vmatpush.msra.mxu0 %v557
        %617 = vmatpush.msra.mxu0 %v555
        %618 = vmatpush.msra.mxu0 %v553
        %619 = vmatpush.msra.mxu0 %v551
        %620 = vmatpush.msra.mxu0 %v549
        %621 = vmatpush.msra.mxu0 %v547
        %622 = vmatpush.msra.mxu0 %v545
        %623 = vmatpush.msra.mxu0 %v543
        %624 = vmatpush.msra.mxu0 %v541
        %625 = vmatpush.msra.mxu0 %v539
        %626 = vmatpush.msra.mxu0 %v537
        %627 = vmatpush.msra.mxu0 %v535
        %628 = vmatmul.f32.gmra.mxu0 %v526
        %v629 = vpop.f32.mrf.mxu0
        %v630 = vadd.f32 %v568, %v629
        %631 = vmatmul.f32.gmra.mxu0 %v527
        %v632 = vpop.f32.mrf.mxu0
        %v633 = vadd.f32 %v568, %v632
        %634 = vmatmul.f32.gmra.mxu0 %v528
        %v635 = vpop.f32.mrf.mxu0
        %v636 = vadd.f32 %v568, %v635
        %637 = vmatmul.f32.gmra.mxu0 %v529
        %v638 = vpop.f32.mrf.mxu0
        %v639 = vadd.f32 %v568, %v638
        %640 = vmatmul.f32.gmra.mxu0 %v530
        %v641 = vpop.f32.mrf.mxu0
        %v642 = vadd.f32 %v568, %v641
        %643 = vmatmul.f32.gmra.mxu0 %v531
        %v644 = vpop.f32.mrf.mxu0
        %v645 = vadd.f32 %v568, %v644
        %646 = vmatmul.f32.gmra.mxu0 %v532
        %v647 = vpop.f32.mrf.mxu0
        %v648 = vadd.f32 %v568, %v647
        %649 = vmatmul.f32.gmra.mxu0 %v533
        %v650 = vpop.f32.mrf.mxu0
        %v651 = vadd.f32 %v568, %v650
        %652 = vdwg.mxu0
        %653 = vst [vmem:[#allocation2] sm:$0xff] %v589
        %654 = vst [vmem:[#allocation2 + $0x8] sm:$0xff] %v630
        %655 = vst [vmem:[#allocation2 + $0x10] sm:$0xff] %v592
        %656 = vst [vmem:[#allocation2 + $0x18] sm:$0xff] %v633
        %657 = vst [vmem:[#allocation2 + $0x20] sm:$0xff] %v595
        %658 = vst [vmem:[#allocation2 + $0x28] sm:$0xff] %v636
        %659 = vst [vmem:[#allocation2 + $0x30] sm:$0xff] %v598
        %660 = vst [vmem:[#allocation2 + $0x38] sm:$0xff] %v639
        %661 = vst [vmem:[#allocation2 + $0x40] sm:$0xff] %v601
        %662 = vst [vmem:[#allocation2 + $0x48] sm:$0xff] %v642
        %663 = vst [vmem:[#allocation2 + $0x50] sm:$0xff] %v604
        %664 = vst [vmem:[#allocation2 + $0x58] sm:$0xff] %v645
        %665 = vst [vmem:[#allocation2 + $0x60] sm:$0xff] %v607
        %666 = vst [vmem:[#allocation2 + $0x68] sm:$0xff] %v648
        %667 = vst [vmem:[#allocation2 + $0x70] sm:$0xff] %v610
        %668 = vst [vmem:[#allocation2 + $0x78] sm:$0xff] %v651
        %v669 = vld [vmem:[#allocation2] sm:$0xff]
        %v670 = vld [vmem:[#allocation2 + $0x8] sm:$0xff]
        %v671 = vld [vmem:[%s4] sm:$0xff]
        %v672 = vld [vmem:[%s4 + $0x8] sm:$0xff]
        %v673 = vld [vmem:[%s4 + $0x10] sm:$0xff]
        %v674 = vld [vmem:[%s4 + $0x18] sm:$0xff]
        %v675 = vld [vmem:[%s4 + $0x20] sm:$0xff]
        %v676 = vld [vmem:[%s4 + $0x28] sm:$0xff]
        %v677 = vld [vmem:[%s4 + $0x30] sm:$0xff]
        %v678 = vld [vmem:[%s4 + $0x38] sm:$0xff]
        %v679 = vld [vmem:[%s4 + $0x40] sm:$0xff]
        %v680 = vld [vmem:[%s4 + $0x48] sm:$0xff]
        %v681 = vld [vmem:[%s4 + $0x50] sm:$0xff]
        %v682 = vld [vmem:[%s4 + $0x58] sm:$0xff]
        %v683 = vld [vmem:[%s4 + $0x60] sm:$0xff]
        %v684 = vld [vmem:[%s4 + $0x68] sm:$0xff]
        %v685 = vld [vmem:[%s4 + $0x70] sm:$0xff]
        %v686 = vld [vmem:[%s4 + $0x78] sm:$0xff]
        %v688 = vsel %vm460, 0.0, 0
        %690 = vmatpush.msra.mxu0 0.0
        %691 = vmatpush.msra.mxu0 0.0
        %692 = vmatpush.msra.mxu0 0.0
        %693 = vmatpush.msra.mxu0 0.0
        %694 = vmatpush.msra.mxu0 0.0
        %695 = vmatpush.msra.mxu0 0.0
        %696 = vmatpush.msra.mxu0 0.0
        %697 = vmatpush.msra.mxu0 0.0
        %698 = vmatpush.msra.mxu0 %v685
        %699 = vmatpush.msra.mxu0 %v683
        %700 = vmatpush.msra.mxu0 %v681
        %701 = vmatpush.msra.mxu0 %v679
        %702 = vmatpush.msra.mxu0 %v677
        %703 = vmatpush.msra.mxu0 %v675
        %704 = vmatpush.msra.mxu0 %v673
        %705 = vmatpush.msra.mxu0 %v671
        %706 = vmatmul.f32.gmra.mxu0 %v688
        %v707 = vpop.f32.mrf.mxu0
        %v708 = vadd.f32 0.0, %v707
        %709 = vdwg.mxu0
        %710 = vmatpush.msra.mxu0 0.0
        %711 = vmatpush.msra.mxu0 0.0
        %712 = vmatpush.msra.mxu0 0.0
        %713 = vmatpush.msra.mxu0 0.0
        %714 = vmatpush.msra.mxu0 0.0
        %715 = vmatpush.msra.mxu0 0.0
        %716 = vmatpush.msra.mxu0 0.0
        %717 = vmatpush.msra.mxu0 0.0
        %718 = vmatpush.msra.mxu0 %v686
        %719 = vmatpush.msra.mxu0 %v684
        %720 = vmatpush.msra.mxu0 %v682
        %721 = vmatpush.msra.mxu0 %v680
        %722 = vmatpush.msra.mxu0 %v678
        %723 = vmatpush.msra.mxu0 %v676
        %724 = vmatpush.msra.mxu0 %v674
        %725 = vmatpush.msra.mxu0 %v672
        %726 = vmatmul.f32.gmra.mxu0 %v688
        %v727 = vpop.f32.mrf.mxu0
        %v728 = vadd.f32 0.0, %v727
        %729 = vdwg.mxu0
        %v730 = vadd.f32 %v669, %v708
        %v731 = vadd.f32 %v670, %v728
        %v732 = vtanh.pop %v730
        %v733 = vtanh.pop %v731
        %v734 = vmul.f32 %v732, 0.5
        %v735 = vadd.f32 %v734, 0.5
        %v736 = vmul.f32 %v733, 0.5
        %v737 = vadd.f32 %v736, 0.5
        %v738 = vmul.f32 %v735, 0.0
        %v739 = vmul.f32 %v735, %v733
        %741 = vrot.lane.b32.xlu0 %v739, 64
        %v742 = vpop.permute.xlu0 %741
        %v744 = vadd.f32 %v738, %v742
        %v745 = vtanh.pop %v744
        %v746 = vmul.f32 %v737, %v745
        %748 = vrot.lane.b32.xlu0 %v746, 64
        %v749 = vpop.permute.xlu0 %748
        %751 = vst.msk [vmem:[#allocation3] sm:$0xff] %vm460, %v749
        %v752 = vld [vmem:[#allocation2 + $0x10] sm:$0xff]
        %v753 = vld [vmem:[#allocation2 + $0x18] sm:$0xff]
        %v754 = vld [vmem:[%s4] sm:$0xff]
        %v755 = vld [vmem:[%s4 + $0x8] sm:$0xff]
        %v756 = vld [vmem:[%s4 + $0x10] sm:$0xff]
        %v757 = vld [vmem:[%s4 + $0x18] sm:$0xff]
        %v758 = vld [vmem:[%s4 + $0x20] sm:$0xff]
        %v759 = vld [vmem:[%s4 + $0x28] sm:$0xff]
        %v760 = vld [vmem:[%s4 + $0x30] sm:$0xff]
        %v761 = vld [vmem:[%s4 + $0x38] sm:$0xff]
        %v762 = vld [vmem:[%s4 + $0x40] sm:$0xff]
        %v763 = vld [vmem:[%s4 + $0x48] sm:$0xff]
        %v764 = vld [vmem:[%s4 + $0x50] sm:$0xff]
        %v765 = vld [vmem:[%s4 + $0x58] sm:$0xff]
        %v766 = vld [vmem:[%s4 + $0x60] sm:$0xff]
        %v767 = vld [vmem:[%s4 + $0x68] sm:$0xff]
        %v768 = vld [vmem:[%s4 + $0x70] sm:$0xff]
        %v769 = vld [vmem:[%s4 + $0x78] sm:$0xff]
        %v770 = vsel %vm460, %v749, 0
        %772 = vmatpush.msra.mxu0 0.0
        %773 = vmatpush.msra.mxu0 0.0
        %774 = vmatpush.msra.mxu0 0.0
        %775 = vmatpush.msra.mxu0 0.0
        %776 = vmatpush.msra.mxu0 0.0
        %777 = vmatpush.msra.mxu0 0.0
        %778 = vmatpush.msra.mxu0 0.0
        %779 = vmatpush.msra.mxu0 0.0
        %780 = vmatpush.msra.mxu0 %v768
        %781 = vmatpush.msra.mxu0 %v766
        %782 = vmatpush.msra.mxu0 %v764
        %783 = vmatpush.msra.mxu0 %v762
        %784 = vmatpush.msra.mxu0 %v760
        %785 = vmatpush.msra.mxu0 %v758
        %786 = vmatpush.msra.mxu0 %v756
        %787 = vmatpush.msra.mxu0 %v754
        %788 = vmatmul.f32.gmra.mxu0 %v770
        %v789 = vpop.f32.mrf.mxu0
        %v790 = vadd.f32 0.0, %v789
        %791 = vdwg.mxu0
        %792 = vmatpush.msra.mxu0 0.0
        %793 = vmatpush.msra.mxu0 0.0
        %794 = vmatpush.msra.mxu0 0.0
        %795 = vmatpush.msra.mxu0 0.0
        %796 = vmatpush.msra.mxu0 0.0
        %797 = vmatpush.msra.mxu0 0.0
        %798 = vmatpush.msra.mxu0 0.0
        %799 = vmatpush.msra.mxu0 0.0
        %800 = vmatpush.msra.mxu0 %v769
        %801 = vmatpush.msra.mxu0 %v767
        %802 = vmatpush.msra.mxu0 %v765
        %803 = vmatpush.msra.mxu0 %v763
        %804 = vmatpush.msra.mxu0 %v761
        %805 = vmatpush.msra.mxu0 %v759
        %806 = vmatpush.msra.mxu0 %v757
        %807 = vmatpush.msra.mxu0 %v755
        %808 = vmatmul.f32.gmra.mxu0 %v770
        %v809 = vpop.f32.mrf.mxu0
        %v810 = vadd.f32 0.0, %v809
        %811 = vdwg.mxu0
        %v812 = vadd.f32 %v752, %v790
        %v813 = vadd.f32 %v753, %v810
        %v814 = vtanh.pop %v812
        %v815 = vtanh.pop %v813
        %v816 = vmul.f32 %v814, 0.5
        %v817 = vadd.f32 %v816, 0.5
        %v818 = vmul.f32 %v815, 0.5
        %v819 = vadd.f32 %v818, 0.5
        %v820 = vmul.f32 %v817, %v744
        %v821 = vmul.f32 %v817, %v815
        %823 = vrot.lane.b32.xlu0 %v821, 64
        %v824 = vpop.permute.xlu0 %823
        %v826 = vadd.f32 %v820, %v824
        %v827 = vtanh.pop %v826
        %v828 = vmul.f32 %v819, %v827
        %830 = vrot.lane.b32.xlu0 %v828, 64
        %v831 = vpop.permute.xlu0 %830
        %833 = vst.msk [vmem:[#allocation3 + $0x8] sm:$0xff] %vm460, %v831
        %v834 = vld [vmem:[#allocation2 + $0x20] sm:$0xff]
        %v835 = vld [vmem:[#allocation2 + $0x28] sm:$0xff]
        %v836 = vld [vmem:[%s4] sm:$0xff]
        %v837 = vld [vmem:[%s4 + $0x8] sm:$0xff]
        %v838 = vld [vmem:[%s4 + $0x10] sm:$0xff]
        %v839 = vld [vmem:[%s4 + $0x18] sm:$0xff]
        %v840 = vld [vmem:[%s4 + $0x20] sm:$0xff]
        %v841 = vld [vmem:[%s4 + $0x28] sm:$0xff]
        %v842 = vld [vmem:[%s4 + $0x30] sm:$0xff]
        %v843 = vld [vmem:[%s4 + $0x38] sm:$0xff]
        %v844 = vld [vmem:[%s4 + $0x40] sm:$0xff]
        %v845 = vld [vmem:[%s4 + $0x48] sm:$0xff]
        %v846 = vld [vmem:[%s4 + $0x50] sm:$0xff]
        %v847 = vld [vmem:[%s4 + $0x58] sm:$0xff]
        %v848 = vld [vmem:[%s4 + $0x60] sm:$0xff]
        %v849 = vld [vmem:[%s4 + $0x68] sm:$0xff]
        %v850 = vld [vmem:[%s4 + $0x70] sm:$0xff]
        %v851 = vld [vmem:[%s4 + $0x78] sm:$0xff]
        %v852 = vsel %vm460, %v831, 0
        %854 = vmatpush.msra.mxu0 0.0
        %855 = vmatpush.msra.mxu0 0.0
        %856 = vmatpush.msra.mxu0 0.0
        %857 = vmatpush.msra.mxu0 0.0
        %858 = vmatpush.msra.mxu0 0.0
        %859 = vmatpush.msra.mxu0 0.0
        %860 = vmatpush.msra.mxu0 0.0
        %861 = vmatpush.msra.mxu0 0.0
        %862 = vmatpush.msra.mxu0 %v850
        %863 = vmatpush.msra.mxu0 %v848
        %864 = vmatpush.msra.mxu0 %v846
        %865 = vmatpush.msra.mxu0 %v844
        %866 = vmatpush.msra.mxu0 %v842
        %867 = vmatpush.msra.mxu0 %v840
        %868 = vmatpush.msra.mxu0 %v838
        %869 = vmatpush.msra.mxu0 %v836
        %870 = vmatmul.f32.gmra.mxu0 %v852
        %v871 = vpop.f32.mrf.mxu0
        %v872 = vadd.f32 0.0, %v871
        %873 = vdwg.mxu0
        %874 = vmatpush.msra.mxu0 0.0
        %875 = vmatpush.msra.mxu0 0.0
        %876 = vmatpush.msra.mxu0 0.0
        %877 = vmatpush.msra.mxu0 0.0
        %878 = vmatpush.msra.mxu0 0.0
        %879 = vmatpush.msra.mxu0 0.0
        %880 = vmatpush.msra.mxu0 0.0
        %881 = vmatpush.msra.mxu0 0.0
        %882 = vmatpush.msra.mxu0 %v851
        %883 = vmatpush.msra.mxu0 %v849
        %884 = vmatpush.msra.mxu0 %v847
        %885 = vmatpush.msra.mxu0 %v845
        %886 = vmatpush.msra.mxu0 %v843
        %887 = vmatpush.msra.mxu0 %v841
        %888 = vmatpush.msra.mxu0 %v839
        %889 = vmatpush.msra.mxu0 %v837
        %890 = vmatmul.f32.gmra.mxu0 %v852
        %v891 = vpop.f32.mrf.mxu0
        %v892 = vadd.f32 0.0, %v891
        %893 = vdwg.mxu0
        %v894 = vadd.f32 %v834, %v872
        %v895 = vadd.f32 %v835, %v892
        %v896 = vtanh.pop %v894
        %v897 = vtanh.pop %v895
        %v898 = vmul.f32 %v896, 0.5
        %v899 = vadd.f32 %v898, 0.5
        %v900 = vmul.f32 %v897, 0.5
        %v901 = vadd.f32 %v900, 0.5
        %v902 = vmul.f32 %v899, %v826
        %v903 = vmul.f32 %v899, %v897
        %905 = vrot.lane.b32.xlu0 %v903, 64
        %v906 = vpop.permute.xlu0 %905
        %v908 = vadd.f32 %v902, %v906
        %v909 = vtanh.pop %v908
        %v910 = vmul.f32 %v901, %v909
        %912 = vrot.lane.b32.xlu0 %v910, 64
        %v913 = vpop.permute.xlu0 %912
        %915 = vst.msk [vmem:[#allocation3 + $0x10] sm:$0xff] %vm460, %v913
        %v916 = vld [vmem:[#allocation2 + $0x30] sm:$0xff]
        %v917 = vld [vmem:[#allocation2 + $0x38] sm:$0xff]
        %v918 = vld [vmem:[%s4] sm:$0xff]
        %v919 = vld [vmem:[%s4 + $0x8] sm:$0xff]
        %v920 = vld [vmem:[%s4 + $0x10] sm:$0xff]
        %v921 = vld [vmem:[%s4 + $0x18] sm:$0xff]
        %v922 = vld [vmem:[%s4 + $0x20] sm:$0xff]
        %v923 = vld [vmem:[%s4 + $0x28] sm:$0xff]
        %v924 = vld [vmem:[%s4 + $0x30] sm:$0xff]
        %v925 = vld [vmem:[%s4 + $0x38] sm:$0xff]
        %v926 = vld [vmem:[%s4 + $0x40] sm:$0xff]
        %v927 = vld [vmem:[%s4 + $0x48] sm:$0xff]
        %v928 = vld [vmem:[%s4 + $0x50] sm:$0xff]
        %v929 = vld [vmem:[%s4 + $0x58] sm:$0xff]
        %v930 = vld [vmem:[%s4 + $0x60] sm:$0xff]
        %v931 = vld [vmem:[%s4 + $0x68] sm:$0xff]
        %v932 = vld [vmem:[%s4 + $0x70] sm:$0xff]
        %v933 = vld [vmem:[%s4 + $0x78] sm:$0xff]
        %v934 = vsel %vm460, %v913, 0
        %936 = vmatpush.msra.mxu0 0.0
        %937 = vmatpush.msra.mxu0 0.0
        %938 = vmatpush.msra.mxu0 0.0
        %939 = vmatpush.msra.mxu0 0.0
        %940 = vmatpush.msra.mxu0 0.0
        %941 = vmatpush.msra.mxu0 0.0
        %942 = vmatpush.msra.mxu0 0.0
        %943 = vmatpush.msra.mxu0 0.0
        %944 = vmatpush.msra.mxu0 %v932
        %945 = vmatpush.msra.mxu0 %v930
        %946 = vmatpush.msra.mxu0 %v928
        %947 = vmatpush.msra.mxu0 %v926
        %948 = vmatpush.msra.mxu0 %v924
        %949 = vmatpush.msra.mxu0 %v922
        %950 = vmatpush.msra.mxu0 %v920
        %951 = vmatpush.msra.mxu0 %v918
        %952 = vmatmul.f32.gmra.mxu0 %v934
        %v953 = vpop.f32.mrf.mxu0
        %v954 = vadd.f32 0.0, %v953
        %955 = vdwg.mxu0
        %956 = vmatpush.msra.mxu0 0.0
        %957 = vmatpush.msra.mxu0 0.0
        %958 = vmatpush.msra.mxu0 0.0
        %959 = vmatpush.msra.mxu0 0.0
        %960 = vmatpush.msra.mxu0 0.0
        %961 = vmatpush.msra.mxu0 0.0
        %962 = vmatpush.msra.mxu0 0.0
        %963 = vmatpush.msra.mxu0 0.0
        %964 = vmatpush.msra.mxu0 %v933
        %965 = vmatpush.msra.mxu0 %v931
        %966 = vmatpush.msra.mxu0 %v929
        %967 = vmatpush.msra.mxu0 %v927
        %968 = vmatpush.msra.mxu0 %v925
        %969 = vmatpush.msra.mxu0 %v923
        %970 = vmatpush.msra.mxu0 %v921
        %971 = vmatpush.msra.mxu0 %v919
        %972 = vmatmul.f32.gmra.mxu0 %v934
        %v973 = vpop.f32.mrf.mxu0
        %v974 = vadd.f32 0.0, %v973
        %975 = vdwg.mxu0
        %v976 = vadd.f32 %v916, %v954
        %v977 = vadd.f32 %v917, %v974
        %v978 = vtanh.pop %v976
        %v979 = vtanh.pop %v977
        %v980 = vmul.f32 %v978, 0.5
        %v981 = vadd.f32 %v980, 0.5
        %v982 = vmul.f32 %v979, 0.5
        %v983 = vadd.f32 %v982, 0.5
        %v984 = vmul.f32 %v981, %v908
        %v985 = vmul.f32 %v981, %v979
        %987 = vrot.lane.b32.xlu0 %v985, 64
        %v988 = vpop.permute.xlu0 %987
        %v990 = vadd.f32 %v984, %v988
        %v991 = vtanh.pop %v990
        %v992 = vmul.f32 %v983, %v991
        %994 = vrot.lane.b32.xlu0 %v992, 64
        %v995 = vpop.permute.xlu0 %994
        %997 = vst.msk [vmem:[#allocation3 + $0x18] sm:$0xff] %vm460, %v995
        %v998 = vld [vmem:[#allocation2 + $0x40] sm:$0xff]
        %v999 = vld [vmem:[#allocation2 + $0x48] sm:$0xff]
        %v1000 = vld [vmem:[%s4] sm:$0xff]
        %v1001 = vld [vmem:[%s4 + $0x8] sm:$0xff]
        %v1002 = vld [vmem:[%s4 + $0x10] sm:$0xff]
        %v1003 = vld [vmem:[%s4 + $0x18] sm:$0xff]
        %v1004 = vld [vmem:[%s4 + $0x20] sm:$0xff]
        %v1005 = vld [vmem:[%s4 + $0x28] sm:$0xff]
        %v1006 = vld [vmem:[%s4 + $0x30] sm:$0xff]
        %v1007 = vld [vmem:[%s4 + $0x38] sm:$0xff]
        %v1008 = vld [vmem:[%s4 + $0x40] sm:$0xff]
        %v1009 = vld [vmem:[%s4 + $0x48] sm:$0xff]
        %v1010 = vld [vmem:[%s4 + $0x50] sm:$0xff]
        %v1011 = vld [vmem:[%s4 + $0x58] sm:$0xff]
        %v1012 = vld [vmem:[%s4 + $0x60] sm:$0xff]
        %v1013 = vld [vmem:[%s4 + $0x68] sm:$0xff]
        %v1014 = vld [vmem:[%s4 + $0x70] sm:$0xff]
        %v1015 = vld [vmem:[%s4 + $0x78] sm:$0xff]
        %v1016 = vsel %vm460, %v995, 0
        %1018 = vmatpush.msra.mxu0 0.0
        %1019 = vmatpush.msra.mxu0 0.0
        %1020 = vmatpush.msra.mxu0 0.0
        %1021 = vmatpush.msra.mxu0 0.0
        %1022 = vmatpush.msra.mxu0 0.0
        %1023 = vmatpush.msra.mxu0 0.0
        %1024 = vmatpush.msra.mxu0 0.0
        %1025 = vmatpush.msra.mxu0 0.0
        %1026 = vmatpush.msra.mxu0 %v1014
        %1027 = vmatpush.msra.mxu0 %v1012
        %1028 = vmatpush.msra.mxu0 %v1010
        %1029 = vmatpush.msra.mxu0 %v1008
        %1030 = vmatpush.msra.mxu0 %v1006
        %1031 = vmatpush.msra.mxu0 %v1004
        %1032 = vmatpush.msra.mxu0 %v1002
        %1033 = vmatpush.msra.mxu0 %v1000
        %1034 = vmatmul.f32.gmra.mxu0 %v1016
        %v1035 = vpop.f32.mrf.mxu0
        %v1036 = vadd.f32 0.0, %v1035
        %1037 = vdwg.mxu0
        %1038 = vmatpush.msra.mxu0 0.0
        %1039 = vmatpush.msra.mxu0 0.0
        %1040 = vmatpush.msra.mxu0 0.0
        %1041 = vmatpush.msra.mxu0 0.0
        %1042 = vmatpush.msra.mxu0 0.0
        %1043 = vmatpush.msra.mxu0 0.0
        %1044 = vmatpush.msra.mxu0 0.0
        %1045 = vmatpush.msra.mxu0 0.0
        %1046 = vmatpush.msra.mxu0 %v1015
        %1047 = vmatpush.msra.mxu0 %v1013
        %1048 = vmatpush.msra.mxu0 %v1011
        %1049 = vmatpush.msra.mxu0 %v1009
        %1050 = vmatpush.msra.mxu0 %v1007
        %1051 = vmatpush.msra.mxu0 %v1005
        %1052 = vmatpush.msra.mxu0 %v1003
        %1053 = vmatpush.msra.mxu0 %v1001
        %1054 = vmatmul.f32.gmra.mxu0 %v1016
        %v1055 = vpop.f32.mrf.mxu0
        %v1056 = vadd.f32 0.0, %v1055
        %1057 = vdwg.mxu0
        %v1058 = vadd.f32 %v998, %v1036
        %v1059 = vadd.f32 %v999, %v1056
        %v1060 = vtanh.pop %v1058
        %v1061 = vtanh.pop %v1059
        %v1062 = vmul.f32 %v1060, 0.5
        %v1063 = vadd.f32 %v1062, 0.5
        %v1064 = vmul.f32 %v1061, 0.5
        %v1065 = vadd.f32 %v1064, 0.5
        %v1066 = vmul.f32 %v1063, %v990
        %v1067 = vmul.f32 %v1063, %v1061
        %1069 = vrot.lane.b32.xlu0 %v1067, 64
        %v1070 = vpop.permute.xlu0 %1069
        %v1072 = vadd.f32 %v1066, %v1070
        %v1073 = vtanh.pop %v1072
        %v1074 = vmul.f32 %v1065, %v1073
        %1076 = vrot.lane.b32.xlu0 %v1074, 64
        %v1077 = vpop.permute.xlu0 %1076
        %1079 = vst.msk [vmem:[#allocation3 + $0x20] sm:$0xff] %vm460, %v1077
        %v1080 = vld [vmem:[#allocation2 + $0x50] sm:$0xff]
        %v1081 = vld [vmem:[#allocation2 + $0x58] sm:$0xff]
        %v1082 = vld [vmem:[%s4] sm:$0xff]
        %v1083 = vld [vmem:[%s4 + $0x8] sm:$0xff]
        %v1084 = vld [vmem:[%s4 + $0x10] sm:$0xff]
        %v1085 = vld [vmem:[%s4 + $0x18] sm:$0xff]
        %v1086 = vld [vmem:[%s4 + $0x20] sm:$0xff]
        %v1087 = vld [vmem:[%s4 + $0x28] sm:$0xff]
        %v1088 = vld [vmem:[%s4 + $0x30] sm:$0xff]
        %v1089 = vld [vmem:[%s4 + $0x38] sm:$0xff]
        %v1090 = vld [vmem:[%s4 + $0x40] sm:$0xff]
        %v1091 = vld [vmem:[%s4 + $0x48] sm:$0xff]
        %v1092 = vld [vmem:[%s4 + $0x50] sm:$0xff]
        %v1093 = vld [vmem:[%s4 + $0x58] sm:$0xff]
        %v1094 = vld [vmem:[%s4 + $0x60] sm:$0xff]
        %v1095 = vld [vmem:[%s4 + $0x68] sm:$0xff]
        %v1096 = vld [vmem:[%s4 + $0x70] sm:$0xff]
        %v1097 = vld [vmem:[%s4 + $0x78] sm:$0xff]
        %v1098 = vsel %vm460, %v1077, 0
        %1100 = vmatpush.msra.mxu0 0.0
        %1101 = vmatpush.msra.mxu0 0.0
        %1102 = vmatpush.msra.mxu0 0.0
        %1103 = vmatpush.msra.mxu0 0.0
        %1104 = vmatpush.msra.mxu0 0.0
        %1105 = vmatpush.msra.mxu0 0.0
        %1106 = vmatpush.msra.mxu0 0.0
        %1107 = vmatpush.msra.mxu0 0.0
        %1108 = vmatpush.msra.mxu0 %v1096
        %1109 = vmatpush.msra.mxu0 %v1094
        %1110 = vmatpush.msra.mxu0 %v1092
        %1111 = vmatpush.msra.mxu0 %v1090
        %1112 = vmatpush.msra.mxu0 %v1088
        %1113 = vmatpush.msra.mxu0 %v1086
        %1114 = vmatpush.msra.mxu0 %v1084
        %1115 = vmatpush.msra.mxu0 %v1082
        %1116 = vmatmul.f32.gmra.mxu0 %v1098
        %v1117 = vpop.f32.mrf.mxu0
        %v1118 = vadd.f32 0.0, %v1117
        %1119 = vdwg.mxu0
        %1120 = vmatpush.msra.mxu0 0.0
        %1121 = vmatpush.msra.mxu0 0.0
        %1122 = vmatpush.msra.mxu0 0.0
        %1123 = vmatpush.msra.mxu0 0.0
        %1124 = vmatpush.msra.mxu0 0.0
        %1125 = vmatpush.msra.mxu0 0.0
        %1126 = vmatpush.msra.mxu0 0.0
        %1127 = vmatpush.msra.mxu0 0.0
        %1128 = vmatpush.msra.mxu0 %v1097
        %1129 = vmatpush.msra.mxu0 %v1095
        %1130 = vmatpush.msra.mxu0 %v1093
        %1131 = vmatpush.msra.mxu0 %v1091
        %1132 = vmatpush.msra.mxu0 %v1089
        %1133 = vmatpush.msra.mxu0 %v1087
        %1134 = vmatpush.msra.mxu0 %v1085
        %1135 = vmatpush.msra.mxu0 %v1083
        %1136 = vmatmul.f32.gmra.mxu0 %v1098
        %v1137 = vpop.f32.mrf.mxu0
        %v1138 = vadd.f32 0.0, %v1137
        %1139 = vdwg.mxu0
        %v1140 = vadd.f32 %v1080, %v1118
        %v1141 = vadd.f32 %v1081, %v1138
        %v1142 = vtanh.pop %v1140
        %v1143 = vtanh.pop %v1141
        %v1144 = vmul.f32 %v1142, 0.5
        %v1145 = vadd.f32 %v1144, 0.5
        %v1146 = vmul.f32 %v1143, 0.5
        %v1147 = vadd.f32 %v1146, 0.5
        %v1148 = vmul.f32 %v1145, %v1072
        %v1149 = vmul.f32 %v1145, %v1143
        %1151 = vrot.lane.b32.xlu0 %v1149, 64
        %v1152 = vpop.permute.xlu0 %1151
        %v1154 = vadd.f32 %v1148, %v1152
        %v1155 = vtanh.pop %v1154
        %v1156 = vmul.f32 %v1147, %v1155
        %1158 = vrot.lane.b32.xlu0 %v1156, 64
        %v1159 = vpop.permute.xlu0 %1158
        %1161 = vst.msk [vmem:[#allocation3 + $0x28] sm:$0xff] %vm460, %v1159
        %v1162 = vld [vmem:[#allocation2 + $0x60] sm:$0xff]
        %v1163 = vld [vmem:[#allocation2 + $0x68] sm:$0xff]
        %v1164 = vld [vmem:[%s4] sm:$0xff]
        %v1165 = vld [vmem:[%s4 + $0x8] sm:$0xff]
        %v1166 = vld [vmem:[%s4 + $0x10] sm:$0xff]
        %v1167 = vld [vmem:[%s4 + $0x18] sm:$0xff]
        %v1168 = vld [vmem:[%s4 + $0x20] sm:$0xff]
        %v1169 = vld [vmem:[%s4 + $0x28] sm:$0xff]
        %v1170 = vld [vmem:[%s4 + $0x30] sm:$0xff]
        %v1171 = vld [vmem:[%s4 + $0x38] sm:$0xff]
        %v1172 = vld [vmem:[%s4 + $0x40] sm:$0xff]
        %v1173 = vld [vmem:[%s4 + $0x48] sm:$0xff]
        %v1174 = vld [vmem:[%s4 + $0x50] sm:$0xff]
        %v1175 = vld [vmem:[%s4 + $0x58] sm:$0xff]
        %v1176 = vld [vmem:[%s4 + $0x60] sm:$0xff]
        %v1177 = vld [vmem:[%s4 + $0x68] sm:$0xff]
        %v1178 = vld [vmem:[%s4 + $0x70] sm:$0xff]
        %v1179 = vld [vmem:[%s4 + $0x78] sm:$0xff]
        %v1180 = vsel %vm460, %v1159, 0
        %1182 = vmatpush.msra.mxu0 0.0
        %1183 = vmatpush.msra.mxu0 0.0
        %1184 = vmatpush.msra.mxu0 0.0
        %1185 = vmatpush.msra.mxu0 0.0
        %1186 = vmatpush.msra.mxu0 0.0
        %1187 = vmatpush.msra.mxu0 0.0
        %1188 = vmatpush.msra.mxu0 0.0
        %1189 = vmatpush.msra.mxu0 0.0
        %1190 = vmatpush.msra.mxu0 %v1178
        %1191 = vmatpush.msra.mxu0 %v1176
        %1192 = vmatpush.msra.mxu0 %v1174
        %1193 = vmatpush.msra.mxu0 %v1172
        %1194 = vmatpush.msra.mxu0 %v1170
        %1195 = vmatpush.msra.mxu0 %v1168
        %1196 = vmatpush.msra.mxu0 %v1166
        %1197 = vmatpush.msra.mxu0 %v1164
        %1198 = vmatmul.f32.gmra.mxu0 %v1180
        %v1199 = vpop.f32.mrf.mxu0
        %v1200 = vadd.f32 0.0, %v1199
        %1201 = vdwg.mxu0
        %1202 = vmatpush.msra.mxu0 0.0
        %1203 = vmatpush.msra.mxu0 0.0
        %1204 = vmatpush.msra.mxu0 0.0
        %1205 = vmatpush.msra.mxu0 0.0
        %1206 = vmatpush.msra.mxu0 0.0
        %1207 = vmatpush.msra.mxu0 0.0
        %1208 = vmatpush.msra.mxu0 0.0
        %1209 = vmatpush.msra.mxu0 0.0
        %1210 = vmatpush.msra.mxu0 %v1179
        %1211 = vmatpush.msra.mxu0 %v1177
        %1212 = vmatpush.msra.mxu0 %v1175
        %1213 = vmatpush.msra.mxu0 %v1173
        %1214 = vmatpush.msra.mxu0 %v1171
        %1215 = vmatpush.msra.mxu0 %v1169
        %1216 = vmatpush.msra.mxu0 %v1167
        %1217 = vmatpush.msra.mxu0 %v1165
        %1218 = vmatmul.f32.gmra.mxu0 %v1180
        %v1219 = vpop.f32.mrf.mxu0
        %v1220 = vadd.f32 0.0, %v1219
        %1221 = vdwg.mxu0
        %v1222 = vadd.f32 %v1162, %v1200
        %v1223 = vadd.f32 %v1163, %v1220
        %v1224 = vtanh.pop %v1222
        %v1225 = vtanh.pop %v1223
        %v1226 = vmul.f32 %v1224, 0.5
        %v1227 = vadd.f32 %v1226, 0.5
        %v1228 = vmul.f32 %v1225, 0.5
        %v1229 = vadd.f32 %v1228, 0.5
        %v1230 = vmul.f32 %v1227, %v1154
        %v1231 = vmul.f32 %v1227, %v1225
        %1233 = vrot.lane.b32.xlu0 %v1231, 64
        %v1234 = vpop.permute.xlu0 %1233
        %v1236 = vadd.f32 %v1230, %v1234
        %v1237 = vtanh.pop %v1236
        %v1238 = vmul.f32 %v1229, %v1237
        %1240 = vrot.lane.b32.xlu0 %v1238, 64
        %v1241 = vpop.permute.xlu0 %1240
        %1243 = vst.msk [vmem:[#allocation3 + $0x30] sm:$0xff] %vm460, %v1241
        %v1244 = vld [vmem:[#allocation2 + $0x70] sm:$0xff]
        %v1245 = vld [vmem:[#allocation2 + $0x78] sm:$0xff]
        %v1246 = vld [vmem:[%s4] sm:$0xff]
        %v1247 = vld [vmem:[%s4 + $0x8] sm:$0xff]
        %v1248 = vld [vmem:[%s4 + $0x10] sm:$0xff]
        %v1249 = vld [vmem:[%s4 + $0x18] sm:$0xff]
        %v1250 = vld [vmem:[%s4 + $0x20] sm:$0xff]
        %v1251 = vld [vmem:[%s4 + $0x28] sm:$0xff]
        %v1252 = vld [vmem:[%s4 + $0x30] sm:$0xff]
        %v1253 = vld [vmem:[%s4 + $0x38] sm:$0xff]
        %v1254 = vld [vmem:[%s4 + $0x40] sm:$0xff]
        %v1255 = vld [vmem:[%s4 + $0x48] sm:$0xff]
        %v1256 = vld [vmem:[%s4 + $0x50] sm:$0xff]
        %v1257 = vld [vmem:[%s4 + $0x58] sm:$0xff]
        %v1258 = vld [vmem:[%s4 + $0x60] sm:$0xff]
        %v1259 = vld [vmem:[%s4 + $0x68] sm:$0xff]
        %v1260 = vld [vmem:[%s4 + $0x70] sm:$0xff]
        %v1261 = vld [vmem:[%s4 + $0x78] sm:$0xff]
        %v1262 = vsel %vm460, %v1241, 0
        %1264 = vmatpush.msra.mxu0 0.0
        %1265 = vmatpush.msra.mxu0 0.0
        %1266 = vmatpush.msra.mxu0 0.0
        %1267 = vmatpush.msra.mxu0 0.0
        %1268 = vmatpush.msra.mxu0 0.0
        %1269 = vmatpush.msra.mxu0 0.0
        %1270 = vmatpush.msra.mxu0 0.0
        %1271 = vmatpush.msra.mxu0 0.0
        %1272 = vmatpush.msra.mxu0 %v1260
        %1273 = vmatpush.msra.mxu0 %v1258
        %1274 = vmatpush.msra.mxu0 %v1256
        %1275 = vmatpush.msra.mxu0 %v1254
        %1276 = vmatpush.msra.mxu0 %v1252
        %1277 = vmatpush.msra.mxu0 %v1250
        %1278 = vmatpush.msra.mxu0 %v1248
        %1279 = vmatpush.msra.mxu0 %v1246
        %1280 = vmatmul.f32.gmra.mxu0 %v1262
        %v1281 = vpop.f32.mrf.mxu0
        %v1282 = vadd.f32 0.0, %v1281
        %1283 = vdwg.mxu0
        %1284 = vmatpush.msra.mxu0 0.0
        %1285 = vmatpush.msra.mxu0 0.0
        %1286 = vmatpush.msra.mxu0 0.0
        %1287 = vmatpush.msra.mxu0 0.0
        %1288 = vmatpush.msra.mxu0 0.0
        %1289 = vmatpush.msra.mxu0 0.0
        %1290 = vmatpush.msra.mxu0 0.0
        %1291 = vmatpush.msra.mxu0 0.0
        %1292 = vmatpush.msra.mxu0 %v1261
        %1293 = vmatpush.msra.mxu0 %v1259
        %1294 = vmatpush.msra.mxu0 %v1257
        %1295 = vmatpush.msra.mxu0 %v1255
        %1296 = vmatpush.msra.mxu0 %v1253
        %1297 = vmatpush.msra.mxu0 %v1251
        %1298 = vmatpush.msra.mxu0 %v1249
        %1299 = vmatpush.msra.mxu0 %v1247
        %1300 = vmatmul.f32.gmra.mxu0 %v1262
        %v1301 = vpop.f32.mrf.mxu0
        %v1302 = vadd.f32 0.0, %v1301
        %1303 = vdwg.mxu0
        %v1304 = vadd.f32 %v1244, %v1282
        %v1305 = vadd.f32 %v1245, %v1302
        %v1306 = vtanh.pop %v1304
        %v1307 = vtanh.pop %v1305
        %v1308 = vmul.f32 %v1306, 0.5
        %v1309 = vadd.f32 %v1308, 0.5
        %v1310 = vmul.f32 %v1307, 0.5
        %v1311 = vadd.f32 %v1310, 0.5
        %v1312 = vmul.f32 %v1309, %v1236
        %v1313 = vmul.f32 %v1309, %v1307
        %1315 = vrot.lane.b32.xlu0 %v1313, 64
        %v1316 = vpop.permute.xlu0 %1315
        %v1318 = vadd.f32 %v1312, %v1316
        %v1319 = vtanh.pop %v1318
        %v1320 = vmul.f32 %v1311, %v1319
        %1322 = vrot.lane.b32.xlu0 %v1320, 64
        %v1323 = vpop.permute.xlu0 %1322
        %1325 = vst.msk [vmem:[#allocation3 + $0x38] sm:$0xff] %vm460, %v1323
        %v1326 = vld [vmem:[#allocation3] sm:$0xff]
        %v1327 = vld [vmem:[#allocation3 + $0x8] sm:$0xff]
        %v1328 = vld [vmem:[#allocation3 + $0x10] sm:$0xff]
        %v1329 = vld [vmem:[#allocation3 + $0x18] sm:$0xff]
        %v1330 = vld [vmem:[#allocation3 + $0x20] sm:$0xff]
        %v1331 = vld [vmem:[#allocation3 + $0x28] sm:$0xff]
        %v1332 = vld [vmem:[#allocation3 + $0x30] sm:$0xff]
        %v1333 = vld [vmem:[#allocation3 + $0x38] sm:$0xff]
        %v1334 = vld [vmem:[%s5] sm:$0xff]
        %v1335 = vld [vmem:[%s5 + $0x8] sm:$0xff]
        %v1336 = vld [vmem:[%s5 + $0x10] sm:$0xff]
        %v1337 = vld [vmem:[%s5 + $0x18] sm:$0xff]
        %v1338 = vld [vmem:[%s5 + $0x20] sm:$0xff]
        %v1339 = vld [vmem:[%s5 + $0x28] sm:$0xff]
        %v1340 = vld [vmem:[%s5 + $0x30] sm:$0xff]
        %v1341 = vld [vmem:[%s5 + $0x38] sm:$0xff]
        %v1343 = vperm.slane %v356, 0
        %v1346 = vsel %vm460, %v1326, 0
        %v1349 = vsel %vm460, %v1327, 0
        %v1352 = vsel %vm460, %v1328, 0
        %v1355 = vsel %vm460, %v1329, 0
        %v1358 = vsel %vm460, %v1330, 0
        %v1361 = vsel %vm460, %v1331, 0
        %v1364 = vsel %vm460, %v1332, 0
        %v1367 = vsel %vm460, %v1333, 0
        %1369 = vmatpush.msra.mxu0 0.0
        %1370 = vmatpush.msra.mxu0 0.0
        %1371 = vmatpush.msra.mxu0 0.0
        %1372 = vmatpush.msra.mxu0 0.0
        %1373 = vmatpush.msra.mxu0 0.0
        %1374 = vmatpush.msra.mxu0 0.0
        %1375 = vmatpush.msra.mxu0 0.0
        %1376 = vmatpush.msra.mxu0 0.0
        %1377 = vmatpush.msra.mxu0 %v1341
        %1378 = vmatpush.msra.mxu0 %v1340
        %1379 = vmatpush.msra.mxu0 %v1339
        %1380 = vmatpush.msra.mxu0 %v1338
        %1381 = vmatpush.msra.mxu0 %v1337
        %1382 = vmatpush.msra.mxu0 %v1336
        %1383 = vmatpush.msra.mxu0 %v1335
        %1384 = vmatpush.msra.mxu0 %v1334
        %1385 = vmatmul.f32.gmra.mxu0 %v1346
        %v1386 = vpop.f32.mrf.mxu0
        %v1387 = vadd.f32 %v1343, %v1386
        %1388 = vmatmul.f32.gmra.mxu0 %v1349
        %v1389 = vpop.f32.mrf.mxu0
        %v1390 = vadd.f32 %v1343, %v1389
        %1391 = vmatmul.f32.gmra.mxu0 %v1352
        %v1392 = vpop.f32.mrf.mxu0
        %v1393 = vadd.f32 %v1343, %v1392
        %1394 = vmatmul.f32.gmra.mxu0 %v1355
        %v1395 = vpop.f32.mrf.mxu0
        %v1396 = vadd.f32 %v1343, %v1395
        %1397 = vmatmul.f32.gmra.mxu0 %v1358
        %v1398 = vpop.f32.mrf.mxu0
        %v1399 = vadd.f32 %v1343, %v1398
        %1400 = vmatmul.f32.gmra.mxu0 %v1361
        %v1401 = vpop.f32.mrf.mxu0
        %v1402 = vadd.f32 %v1343, %v1401
        %1403 = vmatmul.f32.gmra.mxu0 %v1364
        %v1404 = vpop.f32.mrf.mxu0
        %v1405 = vadd.f32 %v1343, %v1404
        %1406 = vmatmul.f32.gmra.mxu0 %v1367
        %v1407 = vpop.f32.mrf.mxu0
        %v1408 = vadd.f32 %v1343, %v1407
        %1409 = vdwg.mxu0
        %v1410 = vmax.f32 %v1387, 0.0
        %v1411 = vmax.f32 %v1390, 0.0
        %v1412 = vmax.f32 %v1393, 0.0
        %v1413 = vmax.f32 %v1396, 0.0
        %v1414 = vmax.f32 %v1399, 0.0
        %v1415 = vmax.f32 %v1402, 0.0
        %v1416 = vmax.f32 %v1405, 0.0
        %v1417 = vmax.f32 %v1408, 0.0
        %v1419 = vperm.slane %v357, 0
        %v1421 = vmul.f32 %v1410, %v1419
        %v1422 = vmul.f32 %v1411, %v1419
        %v1423 = vmul.f32 %v1412, %v1419
        %v1424 = vmul.f32 %v1413, %v1419
        %v1425 = vmul.f32 %v1414, %v1419
        %v1426 = vmul.f32 %v1415, %v1419
        %v1427 = vmul.f32 %v1416, %v1419
        %v1428 = vmul.f32 %v1417, %v1419
        %vm1429 = vcmask 261120
        %v1430 = vsel %vm1429, %v1421, 0.0
        %1431 = vadd.xlane.f32.xlu0 %v1430
        %v1432 = vpop.xlane.xlu0 %1431
        %v1433 = vsel %vm1429, %v1422, 0.0
        %1434 = vadd.xlane.f32.xlu0 %v1433
        %v1435 = vpop.xlane.xlu0 %1434
        %v1436 = vsel %vm1429, %v1423, 0.0
        %1437 = vadd.xlane.f32.xlu0 %v1436
        %v1438 = vpop.xlane.xlu0 %1437
        %v1439 = vsel %vm1429, %v1424, 0.0
        %1440 = vadd.xlane.f32.xlu0 %v1439
        %v1441 = vpop.xlane.xlu0 %1440
        %v1442 = vsel %vm1429, %v1425, 0.0
        %1443 = vadd.xlane.f32.xlu0 %v1442
        %v1444 = vpop.xlane.xlu0 %1443
        %v1445 = vsel %vm1429, %v1426, 0.0
        %1446 = vadd.xlane.f32.xlu0 %v1445
        %v1447 = vpop.xlane.xlu0 %1446
        %v1448 = vsel %vm1429, %v1427, 0.0
        %1449 = vadd.xlane.f32.xlu0 %v1448
        %v1450 = vpop.xlane.xlu0 %1449
        %v1451 = vsel %vm1429, %v1428, 0.0
        %1452 = vadd.xlane.f32.xlu0 %v1451
        %v1453 = vpop.xlane.xlu0 %1452
        %v1455 = vperm.slane %v358, 0
        %v1457 = vadd.f32 %v1432, %v1455
        %v1458 = vadd.f32 %v1435, %v1455
        %v1459 = vadd.f32 %v1438, %v1455
        %v1460 = vadd.f32 %v1441, %v1455
        %v1461 = vadd.f32 %v1444, %v1455
        %v1462 = vadd.f32 %v1447, %v1455
        %v1463 = vadd.f32 %v1450, %v1455
        %v1464 = vadd.f32 %v1453, %v1455
        %v1465 = vtanh.pop %v1457
        %v1466 = vtanh.pop %v1458
        %v1467 = vtanh.pop %v1459
        %v1468 = vtanh.pop %v1460
        %v1469 = vtanh.pop %v1461
        %v1470 = vtanh.pop %v1462
        %v1471 = vtanh.pop %v1463
        %v1472 = vtanh.pop %v1464
        %vm1473 = vcmask 7168
        %1474 = vst.msk [vmem:[%s352] sm:$0xff] %vm1473, %v1465
        %1475 = vst.msk [vmem:[%s352 + $0x8] sm:$0xff] %vm1473, %v1466
        %1476 = vst.msk [vmem:[%s352 + $0x10] sm:$0xff] %vm1473, %v1467
        %1477 = vst.msk [vmem:[%s352 + $0x18] sm:$0xff] %vm1473, %v1468
        %1478 = vst.msk [vmem:[%s352 + $0x20] sm:$0xff] %vm1473, %v1469
        %1479 = vst.msk [vmem:[%s352 + $0x28] sm:$0xff] %vm1473, %v1470
        %1480 = vst.msk [vmem:[%s352 + $0x30] sm:$0xff] %vm1473, %v1471
        %1481 = vst.msk [vmem:[%s352 + $0x38] sm:$0xff] %vm1473, %v1472
        %s1482 = sand.u32 %s179, 1
        %s1483 = sand.u32 %s179, 1
        %s1484 = smul.addr %s1483, 64
        %s1485 = scalar_lea.vmem [#allocation7], %s1484
        // Predicated region
        $region91: #{tpu_custom_call.1} parent=81 // pred_check
          %p1486 = pneg %p189
        $region92: #{tpu_custom_call.1} parent=81 // pred_check_branch
          %1488 = sbr.rel (%p1486) target = $region94
        $region93: #{tpu_custom_call.1} parent=81 // pred_region
          %s1489 = smul.addr %s19, 8
          %s1490 = scalar_lea.vmem %s7, %s1489
          // Predicated region
          $region95: #{tpu_custom_call.1} parent=93 // pred_check
            _
          $region96: #{tpu_custom_call.1} parent=93 // pred_check_branch
            %1492 = sbr.rel (0) target = $region98
          $region97: #{tpu_custom_call.1} parent=93 // pred_region
            // Predicated region
            $region99: #{tpu_custom_call.1} parent=97 // pred_check
              _
            $region100: #{tpu_custom_call.1} parent=97 // pred_check_branch
              %1494 = sbr.rel (0) target = $region102
            $region101: #{tpu_custom_call.1} parent=97 // pred_region
              // Predicated region
              $region114: #{tpu_custom_call.1} parent=101 // pred_check
                _
              $region115: #{tpu_custom_call.1} parent=101 // pred_check_branch
                %1524 = sbr.rel (0) target = $region117
              $region116: #{tpu_custom_call.1} parent=101 // pred_region
                loop: start=0, step=1, limit=1
                $region118: #{tpu_custom_call.1} parent=116 // loop_pre_header
                  _
                $region119: #{tpu_custom_call.1} parent=116 // loop_header
                  %s1526 = sphi 0, %s1530
                  %p1527 = scmp.ge.s32.totalorder %s1526, 1
                  %s1531 = sphi %s1485, %s1485
                  %s1532 = sphi %s1490, %s1490
                $region120: #{tpu_custom_call.1} parent=116 // loop_header_branch
                  %1529 = sbr.rel (%p1527) target = $region124
                $region121: #{tpu_custom_call.1} parent=116 // loop_body
                  %v1533 = vld [vmem:[%s1531] sm:$0xff]
                  %1534 = vst [vmem:[%s1532] sm:$0xff] %v1533
                  %v1535 = vld [vmem:[%s1531 + $0x8] sm:$0xff]
                  %1536 = vst [vmem:[%s1532 + $0x10] sm:$0xff] %v1535
                  %v1537 = vld [vmem:[%s1531 + $0x10] sm:$0xff]
                  %1538 = vst [vmem:[%s1532 + $0x20] sm:$0xff] %v1537
                  %v1539 = vld [vmem:[%s1531 + $0x18] sm:$0xff]
                  %1540 = vst [vmem:[%s1532 + $0x30] sm:$0xff] %v1539
                  %v1541 = vld [vmem:[%s1531 + $0x20] sm:$0xff]
                  %1542 = vst [vmem:[%s1532 + $0x40] sm:$0xff] %v1541
                  %v1543 = vld [vmem:[%s1531 + $0x28] sm:$0xff]
                  %1544 = vst [vmem:[%s1532 + $0x50] sm:$0xff] %v1543
                  %v1545 = vld [vmem:[%s1531 + $0x30] sm:$0xff]
                  %1546 = vst [vmem:[%s1532 + $0x60] sm:$0xff] %v1545
                  %v1547 = vld [vmem:[%s1531 + $0x38] sm:$0xff]
                  %1548 = vst [vmem:[%s1532 + $0x70] sm:$0xff] %v1547
                $region122: #{tpu_custom_call.1} parent=116 // loop_footer
                  %s1530 = sadd.s32 1, %s1526
                $region123: #{tpu_custom_call.1} parent=116 // loop_footer_branch
                  %1525 = sbr.rel target = $region119
                $region124: #{tpu_custom_call.1} parent=116 // loop_exit
                  _
              $region117: #{tpu_custom_call.1} parent=101 // pred_fallthru
                _
              // Predicated region
              $region125: #{tpu_custom_call.1} parent=101 // pred_check
                _
              $region126: #{tpu_custom_call.1} parent=101 // pred_check_branch
                %1550 = sbr.rel target = $region128
              $region127: #{tpu_custom_call.1} parent=101 // pred_region
                _
              $region128: #{tpu_custom_call.1} parent=101 // pred_fallthru
                _
            $region102: #{tpu_custom_call.1} parent=97 // pred_fallthru
              _
            // Predicated region
            $region103: #{tpu_custom_call.1} parent=97 // pred_check
              _
            $region104: #{tpu_custom_call.1} parent=97 // pred_check_branch
              %1496 = sbr.rel target = $region106
            $region105: #{tpu_custom_call.1} parent=97 // pred_region
              %s1498 = ssub.s32 256, 1
              loop: start=0, step=1, limit=1
              $region107: #{tpu_custom_call.1} parent=105 // loop_pre_header
                _
              $region108: #{tpu_custom_call.1} parent=105 // loop_header
                %s1500 = sphi 0, %s1504
                %p1501 = scmp.ge.s32.totalorder %s1500, 1
                %s1505 = sphi %s1485, %s1485
                %s1506 = sphi %s1490, %s1490
              $region109: #{tpu_custom_call.1} parent=105 // loop_header_branch
                %1503 = sbr.rel (%p1501) target = $region113
              $region110: #{tpu_custom_call.1} parent=105 // loop_body
                %v1507 = vld [vmem:[%s1505] sm:%s1498]
                %1508 = vst [vmem:[%s1506] sm:%s1498] %v1507
                %v1509 = vld [vmem:[%s1505 + $0x8] sm:%s1498]
                %1510 = vst [vmem:[%s1506 + $0x10] sm:%s1498] %v1509
                %v1511 = vld [vmem:[%s1505 + $0x10] sm:%s1498]
                %1512 = vst [vmem:[%s1506 + $0x20] sm:%s1498] %v1511
                %v1513 = vld [vmem:[%s1505 + $0x18] sm:%s1498]
                %1514 = vst [vmem:[%s1506 + $0x30] sm:%s1498] %v1513
                %v1515 = vld [vmem:[%s1505 + $0x20] sm:%s1498]
                %1516 = vst [vmem:[%s1506 + $0x40] sm:%s1498] %v1515
                %v1517 = vld [vmem:[%s1505 + $0x28] sm:%s1498]
                %1518 = vst [vmem:[%s1506 + $0x50] sm:%s1498] %v1517
                %v1519 = vld [vmem:[%s1505 + $0x30] sm:%s1498]
                %1520 = vst [vmem:[%s1506 + $0x60] sm:%s1498] %v1519
                %v1521 = vld [vmem:[%s1505 + $0x38] sm:%s1498]
                %1522 = vst [vmem:[%s1506 + $0x70] sm:%s1498] %v1521
              $region111: #{tpu_custom_call.1} parent=105 // loop_footer
                %s1504 = sadd.s32 1, %s1500
              $region112: #{tpu_custom_call.1} parent=105 // loop_footer_branch
                %1499 = sbr.rel target = $region108
              $region113: #{tpu_custom_call.1} parent=105 // loop_exit
                _
            $region106: #{tpu_custom_call.1} parent=97 // pred_fallthru
              _
          $region98: #{tpu_custom_call.1} parent=93 // pred_fallthru
            _
          %1551 = vnop
        $region94: #{tpu_custom_call.1} parent=81 // pred_fallthru
          _
      $region82: #{tpu_custom_call.1} parent=5 // pred_fallthru
        _
      %p1552 = scmp.le.s32.totalorder 2, %s14
      // Predicated region
      $region129: #{tpu_custom_call.1} parent=5 // pred_check
        %p1553 = pneg %p1552
      $region130: #{tpu_custom_call.1} parent=5 // pred_check_branch
        %1555 = sbr.rel (%p1553) target = $region132
      $region131: #{tpu_custom_call.1} parent=5 // pred_region
        %s1556 = ssub.s32 %s14, 2
        // Predicated region
        $region133: #{tpu_custom_call.1} parent=131 // pred_check
          %p1557 = pneg %p195
        $region134: #{tpu_custom_call.1} parent=131 // pred_check_branch
          %1559 = sbr.rel (%p1557) target = $region136
        $region135: #{tpu_custom_call.1} parent=131 // pred_region
          %s1560 = sand.u32 %s180, 1
          %s1561 = sand.u32 %s180, 1
          %s1562 = smul.addr %s1561, 64
          %s1563 = scalar_lea.vmem [#allocation7], %s1562
        $region136: #{tpu_custom_call.1} parent=131 // pred_fallthru
          _
      $region132: #{tpu_custom_call.1} parent=5 // pred_fallthru
        _
    $region6: #{tpu_custom_call.1} parent=1 // loop_footer
      %s18 = sadd.s32 1, %s14
    $region7: #{tpu_custom_call.1} parent=1 // loop_footer_branch
      %13 = sbr.rel target = $region3
    $region8: #{tpu_custom_call.1} parent=1 // loop_exit
      _
    %1564 = vsyncpa [#allocation6], 1
    %s1565 = scalar_lea.sflag [#allocation6], 1
    %1566 = vsyncpa %s1565, 1

</llo_original>
